<compile_context>
chip_gen: v6e
topology: v6e:2x2x1
jax: 0.10.0
libtpu: 0.0.40
codegen_flags: <defaults>
</compile_context>

<pallas_src>
import functools

import jax
import jax.numpy as jnp
from jax.experimental import pallas as pl
from jax.experimental.pallas import tpu as pltpu


_BIG = 1e30      # sentinel distance for masked / already-consumed candidates
_BIG_CUT = 1e29  # anything >= this means "no valid candidate left"


def _round_up(v, m):
    return (v + m - 1) // m * m


def _tpu_config():
    """Returns (vmem_capacity_bytes, mxu_width, multi_tensorcore) with safe fallbacks."""
    kind = ""
    try:
        kind = jax.devices()[0].device_kind.lower()
    except Exception:
        pass
    vmem = 128 * 1024 * 1024
    try:
        info = pltpu.get_tpu_info()
        cap = int(getattr(info, "vmem_capacity_bytes", 0))
        if cap > 0:
            vmem = cap
    except Exception:
        if "v7" in kind:
            vmem = 64 * 1024 * 1024
    mxu = 256 if ("v6" in kind or "v7" in kind) else 128
    multi_core = ("v7" in kind) or ("v4" in kind) or ("v5p" in kind)
    return vmem, mxu, multi_core


def _fp_kernel(pos_t_ref, batch_t_ref, xw1_ref,
               pos_skip_ref, batch_skip_ref, x_skip_ref,
               w1b_ref, b1_ref, w2_ref, b2_ref,
               out_ref, *, k):
    pos_t = pos_t_ref[...]            # (3, Np)     f32 source positions (transposed)
    batch_t = batch_t_ref[...]        # (1, Np)     i32 source batch ids
    ps = pos_skip_ref[...]            # (T, 3)      f32 target (skip) positions, one tile
    bs = batch_skip_ref[...]          # (T, 1)      i32 target batch ids

    # Squared pairwise distances (T, Np): ||a||^2 + ||b||^2 - 2 a.b. The K=3 cross term is
    # done with three VPU broadcast FMAs (a K=3 MXU contraction would waste >95% of a pass).
    cross = (ps[:, 0:1] * pos_t[0:1, :]
             + ps[:, 1:2] * pos_t[1:2, :]
             + ps[:, 2:3] * pos_t[2:3, :])                               # (T, Np)
    ps_sq = jnp.sum(ps * ps, axis=-1, keepdims=True)                     # (T, 1)
    p_sq = jnp.sum(pos_t * pos_t, axis=0, keepdims=True)                 # (1, Np)
    d2 = jnp.maximum(ps_sq + p_sq - 2.0 * cross, 0.0)

    big = jnp.float32(_BIG)
    d2 = jnp.where(bs == batch_t, d2, big)                               # cross-batch mask

    t_rows = ps.shape[0]
    n_src = pos_t.shape[1]
    s_dtype = xw1_ref.dtype                                              # bf16 selection matrix

    # Iterative k-NN selection. The loop only accumulates a bf16 selection-weight matrix S and
    # an f32 weight sum; the single fused feature matmul is hoisted below the loop. Steps with
    # no remaining same-batch candidate contribute nothing (no cross-batch leak; matches knn
    # returning fewer than k neighbors).
    # TODO(synk): exact distance ties select all tied sources with full weight in one step
    # (torch's knn picks an arbitrary one); identical whenever distances are distinct.
    def knn_step(_, carry):
        d2_c, s_c, wsum_c = carry
        m = jnp.min(d2_c, axis=-1, keepdims=True)                        # (T, 1)  XLU reduce
        valid = m < jnp.float32(_BIG_CUT)
        w = jnp.where(valid,
                      pl.reciprocal(jnp.maximum(m, 1e-16), approx=True), # EUP reciprocal
                      0.0)                                               # (T, 1) f32
        sel = d2_c <= m                                                  # (T, Np) bool
        s_c = s_c + w.astype(s_dtype) * sel.astype(s_dtype)              # bf16 accumulate
        wsum_c = wsum_c + w
        d2_c = jnp.where(sel, big, d2_c)
        return d2_c, s_c, wsum_c

    s0 = jnp.zeros((t_rows, n_src), s_dtype)
    w0 = jnp.zeros((t_rows, 1), jnp.float32)
    _, sel_w, wsum = jax.lax.fori_loop(0, k, knn_step, (d2, s0, w0), unroll=True)

    # Fused interpolation + first Linear: dot(S, x @ W1a) * (1/sum w); scale commutes with the
    # right-multiplication by W1a, so this equals (knn_interp(x)) @ W1a exactly.
    h1 = jnp.dot(sel_w, xw1_ref[...], preferred_element_type=jnp.float32)    # (T, H_pad) f32
    inv_wsum = pl.reciprocal(jnp.maximum(wsum, 1e-20), approx=True)          # EUP
    h = (h1 * inv_wsum
         + jnp.dot(x_skip_ref[...], w1b_ref[...], preferred_element_type=jnp.float32)
         + b1_ref[...])
    h = jnp.maximum(h, 0.0)                                                  # ReLU
    w2 = w2_ref[...]
    out = jnp.dot(h.astype(w2.dtype), w2, preferred_element_type=jnp.float32) + b2_ref[...]
    out_ref[...] = out.astype(out_ref.dtype)


def _pick_tile(ns, per_row_bytes, resident_bytes, budget_bytes, mxu, multi_core, max_tile=512):
    """Largest target tile whose per-tile temporaries fit the VMEM budget."""
    avail = max(budget_bytes - resident_bytes, 8 * per_row_bytes)
    tile = int(avail // per_row_bytes)
    tile = max(8, min(max_tile, tile))
    if tile >= mxu:
        tile = (tile // mxu) * mxu            # MXU-aligned M dim (256 on v6e/v7x, 128 on v5e)
    else:
        tile = max(8, (tile // 8) * 8)
    tile = min(tile, _round_up(ns, 8))
    tile = max(8, (tile // 8) * 8)
    # Only multi-TensorCore chips benefit from >= 2 grid steps; on single-TC chips the grid is
    # a serial loop and splitting just adds per-step overhead.
    if multi_core and (_round_up(ns, tile) // tile) < 2 and tile > 8:
        tile = max(8, ((tile // 2) // 8) * 8)
    return tile


def fp_module_forward(x, pos, batch, x_skip, pos_skip, batch_skip, params, *,
                      k=3, tile=None, compute_dtype=jnp.bfloat16,
                      vmem_budget_bytes=None, out_dtype=None):
    """Returns (nn(concat(knn_interpolate(x, ...), x_skip)), pos_skip, batch_skip)."""
    N, C_in = x.shape
    Ns, C_skip = x_skip.shape
    w1a, w1b, b1, w2, b2 = params
    H = w1a.shape[1]
    C_out = w2.shape[1]
    bytes_cd = jnp.dtype(compute_dtype).itemsize
    if out_dtype is None:
        out_dtype = x.dtype

    vmem_cap, mxu, multi_core = _tpu_config()
    small_vmem = vmem_cap <= 64 * 1024 * 1024                   # v7x: 64 MiB per TensorCore
    if vmem_budget_bytes is None:
        vmem_budget_bytes = (24 * 1024 * 1024) if small_vmem else (48 * 1024 * 1024)
    vmem_cap_limit = (48 * 1024 * 1024 if small_vmem
                      else min(100 * 1024 * 1024, vmem_cap - 28 * 1024 * 1024))

    # ---- pad source axis to an MXU-aligned multiple; pad H / C_out to 128 lanes ------------
    Np = _round_up(max(N, mxu), mxu)
    H_pad = _round_up(max(H, 128), 128)
    C_out_pad = _round_up(max(C_out, 128), 128)

    pos_t = jnp.zeros((3, Np), jnp.float32).at[:, :N].set(pos.T.astype(jnp.float32))
    batch_t = jnp.full((1, Np), -2, jnp.int32).at[:, :N].set(batch.astype(jnp.int32)[None, :])

    # Fuse the interpolation matmul into the first Linear: xw1 = x @ W1a (grid-invariant).
    w1a_pad = jnp.zeros((C_in, H_pad), jnp.float32).at[:, :H].set(w1a.astype(jnp.float32))
    x_f32 = jnp.zeros((Np, C_in), jnp.float32).at[:N, :].set(x.astype(jnp.float32))
    xw1 = (x_f32 @ w1a_pad).astype(compute_dtype)                       # (Np, H_pad) bf16

    w1b_c = jnp.zeros((C_skip, H_pad), compute_dtype).at[:, :H].set(w1b.astype(compute_dtype))
    b1_c = jnp.zeros((1, H_pad), jnp.float32).at[:, :H].set(b1.reshape(1, H).astype(jnp.float32))
    w2_c = jnp.zeros((H_pad, C_out_pad), compute_dtype).at[:H, :C_out].set(w2.astype(compute_dtype))
    b2_c = jnp.zeros((1, C_out_pad), jnp.float32).at[:, :C_out].set(
        b2.reshape(1, C_out).astype(jnp.float32))

    # ---- unified VMEM model: resident (single-buffered invariants) + per-target-row bytes --
    resident_bytes = (3 * Np * 4 + Np * 4 + Np * H_pad * bytes_cd       # pos_t, batch_t, xw1
                      + C_skip * H_pad * bytes_cd + H_pad * 4           # W1b, b1
                      + H_pad * C_out_pad * bytes_cd + C_out_pad * 4)   # W2, b2
    per_row_bytes = (Np * (3 * 4 + bytes_cd)                            # d2 carry + 2 f32 work + bf16 S
                     + 2 * (3 * 4 + 4 + C_skip * bytes_cd + C_out_pad * bytes_cd)  # tiled I/O (x2 buf)
                     + 2 * H_pad * 4)                                   # hidden activations

    if tile is None:
        tile = _pick_tile(Ns, per_row_bytes, resident_bytes, vmem_budget_bytes, mxu, multi_core)
    assert tile % 8 == 0

    Ns_pad = _round_up(Ns, tile)
    pos_skip_p = jnp.zeros((Ns_pad, 3), jnp.float32).at[:Ns].set(pos_skip.astype(jnp.float32))
    batch_skip_p = (jnp.full((Ns_pad, 1), -1, jnp.int32)
                    .at[:Ns, 0].set(batch_skip.astype(jnp.int32)))      # pad rows match nothing
    x_skip_p = jnp.zeros((Ns_pad, C_skip), compute_dtype).at[:Ns].set(x_skip.astype(compute_dtype))

    est_bytes = resident_bytes + tile * per_row_bytes
    vmem_limit = int(min(max(int(1.4 * est_bytes), 32 * 1024 * 1024), vmem_cap_limit))

    flops = int(8 * Ns_pad * Np                      # pairwise distances
                + 2 * Ns_pad * Np * H_pad            # fused interpolation + first Linear
                + 2 * Ns_pad * C_skip * H_pad        # skip branch of first Linear
                + 2 * Ns_pad * H_pad * C_out_pad)    # second Linear
    bytes_accessed = int(resident_bytes
                         + Ns_pad * (3 * 4 + 4 + C_skip * bytes_cd + C_out_pad * bytes_cd))
    cost = pl.CostEstimate(flops=flops, transcendentals=int(Ns_pad * (k + 1)),
                           bytes_accessed=bytes_accessed)

    kernel = functools.partial(_fp_kernel, k=k)

    def _in_specs(single_buffer):
        def const_spec(shape):
            if single_buffer:
                return pl.BlockSpec(shape, lambda i: (0, 0), pipeline_mode=pl.Buffered(1))
            return pl.BlockSpec(shape, lambda i: (0, 0))
        return [
            const_spec((3, Np)),                               # pos (transposed), resident
            const_spec((1, Np)),                               # batch (transposed), resident
            const_spec((Np, H_pad)),                           # xw1 = x @ W1a (bf16), resident
            pl.BlockSpec((tile, 3), lambda i: (i, 0)),         # pos_skip tile
            pl.BlockSpec((tile, 1), lambda i: (i, 0)),         # batch_skip tile
            pl.BlockSpec((tile, C_skip), lambda i: (i, 0)),    # x_skip tile
            const_spec((C_skip, H_pad)),                       # W1b
            const_spec((1, H_pad)),                            # b1
            const_spec((H_pad, C_out_pad)),                    # W2 (lane-padded)
            const_spec((1, C_out_pad)),                        # b2 (lane-padded)
        ]

    def _run(single_buffer):
        return pl.pallas_call(
            kernel,
            out_shape=jax.ShapeDtypeStruct((Ns_pad, C_out_pad), compute_dtype),
            grid=(Ns_pad // tile,),
            in_specs=_in_specs(single_buffer),
            out_specs=pl.BlockSpec((tile, C_out_pad), lambda i: (i, 0)),
            compiler_params=pltpu.CompilerParams(
                dimension_semantics=("parallel",),
                vmem_limit_bytes=vmem_limit),
            cost_estimate=cost,
        )(pos_t, batch_t, xw1, pos_skip_p, batch_skip_p, x_skip_p,
          w1b_c, b1_c, w2_c, b2_c)

    try:
        out_pad = _run(True)
    except Exception:
        # TODO(synk): pl.Buffered(1) not accepted by this jax build; fall back to the default
        # double-buffered invariant inputs (correct, just a larger resident VMEM footprint).
        out_pad = _run(False)

    return out_pad[:Ns, :C_out].astype(out_dtype), pos_skip, batch_skip


def _reference(x, pos, batch, x_skip, pos_skip, batch_skip, params, k):
    """Pure-JAX f32 reference of knn_interpolate + concat + MLP (same distance expansion)."""
    w1a, w1b, b1, w2, b2 = params
    d2 = (jnp.sum(pos_skip ** 2, -1, keepdims=True)
          + jnp.sum(pos ** 2, -1)[None, :]
          - 2.0 * pos_skip @ pos.T)
    d2 = jnp.maximum(d2, 0.0)
    d2 = jnp.where(batch_skip[:, None] == batch[None, :], d2, jnp.inf)
    vals, idx = jax.lax.top_k(-d2, k)                       # k smallest distances
    dk = -vals
    w = jnp.where(jnp.isfinite(dk), 1.0 / jnp.maximum(dk, 1e-16), 0.0)
    xi = (w[..., None] * x[idx]).sum(1) / jnp.maximum(w.sum(1, keepdims=True), 1e-20)
    h = jnp.maximum(xi @ w1a + x_skip @ w1b + b1.reshape(1, -1), 0.0)
    return h @ w2 + b2.reshape(1, -1)


if __name__ == "__main__":
    key = jax.random.PRNGKey(0)
    keys = jax.random.split(key, 9)

    # Small shapes: 8 coarse (source) points, 16 fine (skip/target) points, 2 batches.
    N, Ns = 8, 16
    C_in, C_skip, H, C_out = 8, 8, 32, 16
    k = 3

    x = jax.random.normal(keys[0], (N, C_in), jnp.float32)
    pos = jax.random.normal(keys[1], (N, 3), jnp.float32)
    batch = jnp.array([0] * 4 + [1] * 4, jnp.int32)

    x_skip = jax.random.normal(keys[2], (Ns, C_skip), jnp.float32)
    pos_skip = jax.random.normal(keys[3], (Ns, 3), jnp.float32)
    batch_skip = jnp.array([0] * 8 + [1] * 8, jnp.int32)

    # Deterministic MLP params (Linear(C_in+C_skip -> H) split into W1a/W1b, Linear(H -> C_out)).
    w1a = 0.1 * jax.random.normal(keys[4], (C_in, H), jnp.float32)
    w1b = 0.1 * jax.random.normal(keys[5], (C_skip, H), jnp.float32)
    b1 = 0.1 * jax.random.normal(keys[6], (1, H), jnp.float32)
    w2 = 0.1 * jax.random.normal(keys[7], (H, C_out), jnp.float32)
    b2 = 0.1 * jax.random.normal(keys[8], (1, C_out), jnp.float32)
    params = (w1a, w1b, b1, w2, b2)

    out, pos_out, batch_out = fp_module_forward(
        x, pos, batch, x_skip, pos_skip, batch_skip, params, k=k)
    jax.block_until_ready(out)

    assert out.shape == (Ns, C_out)
    assert bool(jnp.all(jnp.isfinite(out)))

    ref = _reference(x, pos, batch, x_skip, pos_skip, batch_skip, params, k)
    max_err = float(jnp.max(jnp.abs(out - ref)))
    assert max_err < 5e-2, f"max abs error vs reference: {max_err}"

    print("KERNEL_OK")
</pallas_src>

<mosaic_0001>
module attributes {stable_mosaic.version = 11 : i64} {
  func.func @_fp_kernel(%arg0: i32, %arg1: memref<3x128xf32, #tpu.memory_space<vmem>>, %arg2: memref<1x128xi32, #tpu.memory_space<vmem>>, %arg3: memref<128x128xbf16, #tpu.memory_space<vmem>>, %arg4: memref<16x3xf32, #tpu.memory_space<vmem>>, %arg5: memref<16x1xi32, #tpu.memory_space<vmem>>, %arg6: memref<16x8xbf16, #tpu.memory_space<vmem>>, %arg7: memref<8x128xbf16, #tpu.memory_space<vmem>>, %arg8: memref<1x128xf32, #tpu.memory_space<vmem>>, %arg9: memref<128x128xbf16, #tpu.memory_space<vmem>>, %arg10: memref<1x128xf32, #tpu.memory_space<vmem>>, %arg11: memref<16x128xbf16, #tpu.memory_space<vmem>>) attributes {dimension_semantics = [#tpu.dimension_semantics<parallel>], iteration_bounds = array<i64: 1>, scalar_prefetch = 0 : i64, scratch_operands = 0 : i64, tpu.core_type = #tpu.core_type<tc>, window_params = [{pipeline_mode = #tpu.pipeline_mode<synchronous>, transform_indices = @transform_0, window_bounds = array<i64: 3, 128>}, {pipeline_mode = #tpu.pipeline_mode<synchronous>, transform_indices = @transform_1, window_bounds = array<i64: 1, 128>}, {pipeline_mode = #tpu.pipeline_mode<synchronous>, transform_indices = @transform_2, window_bounds = array<i64: 128, 128>}, {transform_indices = @transform_3, window_bounds = array<i64: 16, 3>}, {transform_indices = @transform_4, window_bounds = array<i64: 16, 1>}, {transform_indices = @transform_5, window_bounds = array<i64: 16, 8>}, {pipeline_mode = #tpu.pipeline_mode<synchronous>, transform_indices = @transform_6, window_bounds = array<i64: 8, 128>}, {pipeline_mode = #tpu.pipeline_mode<synchronous>, transform_indices = @transform_7, window_bounds = array<i64: 1, 128>}, {pipeline_mode = #tpu.pipeline_mode<synchronous>, transform_indices = @transform_8, window_bounds = array<i64: 128, 128>}, {pipeline_mode = #tpu.pipeline_mode<synchronous>, transform_indices = @transform_9, window_bounds = array<i64: 1, 128>}, {transform_indices = @transform_10, window_bounds = array<i64: 16, 128>}]} {
    %c0 = arith.constant 0 : index
    %c0_0 = arith.constant 0 : index
    %0 = vector.load %arg1[%c0, %c0_0] : memref<3x128xf32, #tpu.memory_space<vmem>>, vector<3x128xf32>
    %c0_1 = arith.constant 0 : index
    %c0_2 = arith.constant 0 : index
    %1 = vector.load %arg2[%c0_1, %c0_2] : memref<1x128xi32, #tpu.memory_space<vmem>>, vector<1x128xi32>
    %c0_3 = arith.constant 0 : index
    %c0_4 = arith.constant 0 : index
    %2 = vector.load %arg4[%c0_3, %c0_4] : memref<16x3xf32, #tpu.memory_space<vmem>>, vector<16x3xf32>
    %c0_5 = arith.constant 0 : index
    %c0_6 = arith.constant 0 : index
    %3 = vector.load %arg5[%c0_5, %c0_6] : memref<16x1xi32, #tpu.memory_space<vmem>>, vector<16x1xi32>
    %4 = vector.extract_strided_slice %2 {offsets = [0, 0], sizes = [16, 1], strides = [1, 1]} : vector<16x3xf32> to vector<16x1xf32>
    %5 = vector.extract_strided_slice %0 {offsets = [0, 0], sizes = [1, 128], strides = [1, 1]} : vector<3x128xf32> to vector<1x128xf32>
    %6 = vector.broadcast %4 : vector<16x1xf32> to vector<16x128xf32>
    %7 = vector.broadcast %5 : vector<1x128xf32> to vector<16x128xf32>
    %8 = arith.mulf %6, %7 : vector<16x128xf32>
    %9 = vector.extract_strided_slice %2 {offsets = [0, 1], sizes = [16, 1], strides = [1, 1]} : vector<16x3xf32> to vector<16x1xf32>
    %10 = vector.extract_strided_slice %0 {offsets = [1, 0], sizes = [1, 128], strides = [1, 1]} : vector<3x128xf32> to vector<1x128xf32>
    %11 = vector.broadcast %9 : vector<16x1xf32> to vector<16x128xf32>
    %12 = vector.broadcast %10 : vector<1x128xf32> to vector<16x128xf32>
    %13 = arith.mulf %11, %12 : vector<16x128xf32>
    %14 = arith.addf %8, %13 : vector<16x128xf32>
    %15 = vector.extract_strided_slice %2 {offsets = [0, 2], sizes = [16, 1], strides = [1, 1]} : vector<16x3xf32> to vector<16x1xf32>
    %16 = vector.extract_strided_slice %0 {offsets = [2, 0], sizes = [1, 128], strides = [1, 1]} : vector<3x128xf32> to vector<1x128xf32>
    %17 = vector.broadcast %15 : vector<16x1xf32> to vector<16x128xf32>
    %18 = vector.broadcast %16 : vector<1x128xf32> to vector<16x128xf32>
    %19 = arith.mulf %17, %18 : vector<16x128xf32>
    %20 = arith.addf %14, %19 : vector<16x128xf32>
    %21 = arith.mulf %2, %2 : vector<16x3xf32>
    %cst = arith.constant dense<0.000000e+00> : vector<16xf32>
    %22 = vector.multi_reduction <add>, %21, %cst [1] : vector<16x3xf32> to vector<16xf32>
    %23 = vector.shape_cast %22 : vector<16xf32> to vector<16x1xf32>
    %24 = arith.mulf %0, %0 : vector<3x128xf32>
    %cst_7 = arith.constant dense<0.000000e+00> : vector<128xf32>
    %25 = vector.multi_reduction <add>, %24, %cst_7 [0] : vector<3x128xf32> to vector<128xf32>
    %26 = vector.shape_cast %25 : vector<128xf32> to vector<1x128xf32>
    %27 = vector.broadcast %23 : vector<16x1xf32> to vector<16x128xf32>
    %28 = vector.broadcast %26 : vector<1x128xf32> to vector<16x128xf32>
    %29 = arith.addf %27, %28 : vector<16x128xf32>
    %cst_8 = arith.constant 2.000000e+00 : f32
    %30 = vector.broadcast %cst_8 : f32 to vector<16x128xf32>
    %31 = arith.mulf %30, %20 : vector<16x128xf32>
    %32 = arith.subf %29, %31 : vector<16x128xf32>
    %cst_9 = arith.constant 0.000000e+00 : f32
    %33 = vector.broadcast %cst_9 : f32 to vector<16x128xf32>
    %34 = arith.maximumf %32, %33 : vector<16x128xf32>
    %35 = vector.broadcast %3 : vector<16x1xi32> to vector<16x128xi32>
    %36 = vector.broadcast %1 : vector<1x128xi32> to vector<16x128xi32>
    %37 = arith.cmpi eq, %35, %36 : vector<16x128xi32>
    %cst_10 = arith.constant 1.000000e+30 : f32
    %38 = vector.broadcast %cst_10 : f32 to vector<16x128xf32>
    %39 = arith.select %37, %34, %38 : vector<16x128xi1>, vector<16x128xf32>
    %cst_11 = arith.constant 0.000000e+00 : bf16
    %40 = vector.broadcast %cst_11 : bf16 to vector<16x128xbf16>
    %cst_12 = arith.constant 0.000000e+00 : f32
    %41 = vector.broadcast %cst_12 : f32 to vector<16x1xf32>
    %cst_13 = arith.constant 1.000000e+30 : f32
    %c0_i32 = arith.constant 0 : i32
    %cst_14 = arith.constant dense<0x7F800000> : vector<16xf32>
    %42 = vector.multi_reduction <minimumf>, %39, %cst_14 [1] : vector<16x128xf32> to vector<16xf32>
    %43 = vector.shape_cast %42 : vector<16xf32> to vector<16x1xf32>
    %cst_15 = arith.constant 1.000000e+29 : f32
    %44 = vector.broadcast %cst_15 : f32 to vector<16x1xf32>
    %45 = arith.cmpf olt, %43, %44 : vector<16x1xf32>
    %cst_16 = arith.constant 1.000000e-16 : f32
    %46 = vector.broadcast %cst_16 : f32 to vector<16x1xf32>
    %47 = arith.maximumf %43, %46 : vector<16x1xf32>
    %48 = tpu.reciprocal %47 {approx = true} : vector<16x1xf32> -> vector<16x1xf32>
    %cst_17 = arith.constant 0.000000e+00 : f32
    %49 = vector.broadcast %cst_17 : f32 to vector<16x1xf32>
    %50 = arith.select %45, %48, %49 : vector<16x1xi1>, vector<16x1xf32>
    %51 = vector.broadcast %43 : vector<16x1xf32> to vector<16x128xf32>
    %52 = arith.cmpf ole, %39, %51 : vector<16x128xf32>
    %53 = arith.truncf %50 : vector<16x1xf32> to vector<16x1xbf16>
    %54 = arith.extui %52 : vector<16x128xi1> to vector<16x128xi32>
    %55 = arith.sitofp %54 : vector<16x128xi32> to vector<16x128xf32>
    %56 = arith.truncf %55 : vector<16x128xf32> to vector<16x128xbf16>
    %57 = vector.broadcast %53 : vector<16x1xbf16> to vector<16x128xbf16>
    %58 = arith.mulf %57, %56 : vector<16x128xbf16>
    %59 = arith.addf %40, %58 : vector<16x128xbf16>
    %60 = arith.addf %41, %50 : vector<16x1xf32>
    %61 = vector.broadcast %cst_13 : f32 to vector<16x128xf32>
    %62 = arith.select %52, %61, %39 : vector<16x128xi1>, vector<16x128xf32>
    %c1_i32 = arith.constant 1 : i32
    %cst_18 = arith.constant dense<0x7F800000> : vector<16xf32>
    %63 = vector.multi_reduction <minimumf>, %62, %cst_18 [1] : vector<16x128xf32> to vector<16xf32>
    %64 = vector.shape_cast %63 : vector<16xf32> to vector<16x1xf32>
    %cst_19 = arith.constant 1.000000e+29 : f32
    %65 = vector.broadcast %cst_19 : f32 to vector<16x1xf32>
    %66 = arith.cmpf olt, %64, %65 : vector<16x1xf32>
    %cst_20 = arith.constant 1.000000e-16 : f32
    %67 = vector.broadcast %cst_20 : f32 to vector<16x1xf32>
    %68 = arith.maximumf %64, %67 : vector<16x1xf32>
    %69 = tpu.reciprocal %68 {approx = true} : vector<16x1xf32> -> vector<16x1xf32>
    %cst_21 = arith.constant 0.000000e+00 : f32
    %70 = vector.broadcast %cst_21 : f32 to vector<16x1xf32>
    %71 = arith.select %66, %69, %70 : vector<16x1xi1>, vector<16x1xf32>
    %72 = vector.broadcast %64 : vector<16x1xf32> to vector<16x128xf32>
    %73 = arith.cmpf ole, %62, %72 : vector<16x128xf32>
    %74 = arith.truncf %71 : vector<16x1xf32> to vector<16x1xbf16>
    %75 = arith.extui %73 : vector<16x128xi1> to vector<16x128xi32>
    %76 = arith.sitofp %75 : vector<16x128xi32> to vector<16x128xf32>
    %77 = arith.truncf %76 : vector<16x128xf32> to vector<16x128xbf16>
    %78 = vector.broadcast %74 : vector<16x1xbf16> to vector<16x128xbf16>
    %79 = arith.mulf %78, %77 : vector<16x128xbf16>
    %80 = arith.addf %59, %79 : vector<16x128xbf16>
    %81 = arith.addf %60, %71 : vector<16x1xf32>
    %82 = vector.broadcast %cst_13 : f32 to vector<16x128xf32>
    %83 = arith.select %73, %82, %62 : vector<16x128xi1>, vector<16x128xf32>
    %c2_i32 = arith.constant 2 : i32
    %cst_22 = arith.constant dense<0x7F800000> : vector<16xf32>
    %84 = vector.multi_reduction <minimumf>, %83, %cst_22 [1] : vector<16x128xf32> to vector<16xf32>
    %85 = vector.shape_cast %84 : vector<16xf32> to vector<16x1xf32>
    %cst_23 = arith.constant 1.000000e+29 : f32
    %86 = vector.broadcast %cst_23 : f32 to vector<16x1xf32>
    %87 = arith.cmpf olt, %85, %86 : vector<16x1xf32>
    %cst_24 = arith.constant 1.000000e-16 : f32
    %88 = vector.broadcast %cst_24 : f32 to vector<16x1xf32>
    %89 = arith.maximumf %85, %88 : vector<16x1xf32>
    %90 = tpu.reciprocal %89 {approx = true} : vector<16x1xf32> -> vector<16x1xf32>
    %cst_25 = arith.constant 0.000000e+00 : f32
    %91 = vector.broadcast %cst_25 : f32 to vector<16x1xf32>
    %92 = arith.select %87, %90, %91 : vector<16x1xi1>, vector<16x1xf32>
    %93 = vector.broadcast %85 : vector<16x1xf32> to vector<16x128xf32>
    %94 = arith.cmpf ole, %83, %93 : vector<16x128xf32>
    %95 = arith.truncf %92 : vector<16x1xf32> to vector<16x1xbf16>
    %96 = arith.extui %94 : vector<16x128xi1> to vector<16x128xi32>
    %97 = arith.sitofp %96 : vector<16x128xi32> to vector<16x128xf32>
    %98 = arith.truncf %97 : vector<16x128xf32> to vector<16x128xbf16>
    %99 = vector.broadcast %95 : vector<16x1xbf16> to vector<16x128xbf16>
    %100 = arith.mulf %99, %98 : vector<16x128xbf16>
    %101 = arith.addf %80, %100 : vector<16x128xbf16>
    %102 = arith.addf %81, %92 : vector<16x1xf32>
    %103 = vector.broadcast %cst_13 : f32 to vector<16x128xf32>
    %104 = arith.select %94, %103, %83 : vector<16x128xi1>, vector<16x128xf32>
    %c0_26 = arith.constant 0 : index
    %c0_27 = arith.constant 0 : index
    %105 = vector.load %arg3[%c0_26, %c0_27] : memref<128x128xbf16, #tpu.memory_space<vmem>>, vector<128x128xbf16>
    %cst_28 = arith.constant dense<0.000000e+00> : vector<16x128xf32>
    %106 = tpu.matmul %101, %105, %cst_28 {dimension_numbers = #tpu.dot_dimension_numbers<[1], [0], [0], [1], [0, 0, 1, 1], [], []>} : vector<16x128xbf16>, vector<128x128xbf16>, vector<16x128xf32> -> vector<16x128xf32>
    %cst_29 = arith.constant 9.99999968E-21 : f32
    %107 = vector.broadcast %cst_29 : f32 to vector<16x1xf32>
    %108 = arith.maximumf %102, %107 : vector<16x1xf32>
    %109 = tpu.reciprocal %108 {approx = true} : vector<16x1xf32> -> vector<16x1xf32>
    %110 = vector.broadcast %109 : vector<16x1xf32> to vector<16x128xf32>
    %111 = arith.mulf %106, %110 : vector<16x128xf32>
    %c0_30 = arith.constant 0 : index
    %c0_31 = arith.constant 0 : index
    %112 = vector.load %arg6[%c0_30, %c0_31] : memref<16x8xbf16, #tpu.memory_space<vmem>>, vector<16x8xbf16>
    %c0_32 = arith.constant 0 : index
    %c0_33 = arith.constant 0 : index
    %113 = vector.load %arg7[%c0_32, %c0_33] : memref<8x128xbf16, #tpu.memory_space<vmem>>, vector<8x128xbf16>
    %cst_34 = arith.constant dense<0.000000e+00> : vector<16x128xf32>
    %114 = tpu.matmul %112, %113, %cst_34 {dimension_numbers = #tpu.dot_dimension_numbers<[1], [0], [0], [1], [0, 0, 1, 1], [], []>} : vector<16x8xbf16>, vector<8x128xbf16>, vector<16x128xf32> -> vector<16x128xf32>
    %115 = arith.addf %111, %114 : vector<16x128xf32>
    %c0_35 = arith.constant 0 : index
    %c0_36 = arith.constant 0 : index
    %116 = vector.load %arg8[%c0_35, %c0_36] : memref<1x128xf32, #tpu.memory_space<vmem>>, vector<1x128xf32>
    %117 = vector.broadcast %116 : vector<1x128xf32> to vector<16x128xf32>
    %118 = arith.addf %115, %117 : vector<16x128xf32>
    %cst_37 = arith.constant 0.000000e+00 : f32
    %119 = vector.broadcast %cst_37 : f32 to vector<16x128xf32>
    %120 = arith.maximumf %118, %119 : vector<16x128xf32>
    %c0_38 = arith.constant 0 : index
    %c0_39 = arith.constant 0 : index
    %121 = vector.load %arg9[%c0_38, %c0_39] : memref<128x128xbf16, #tpu.memory_space<vmem>>, vector<128x128xbf16>
    %122 = arith.truncf %120 : vector<16x128xf32> to vector<16x128xbf16>
    %cst_40 = arith.constant dense<0.000000e+00> : vector<16x128xf32>
    %123 = tpu.matmul %122, %121, %cst_40 {dimension_numbers = #tpu.dot_dimension_numbers<[1], [0], [0], [1], [0, 0, 1, 1], [], []>} : vector<16x128xbf16>, vector<128x128xbf16>, vector<16x128xf32> -> vector<16x128xf32>
    %c0_41 = arith.constant 0 : index
    %c0_42 = arith.constant 0 : index
    %124 = vector.load %arg10[%c0_41, %c0_42] : memref<1x128xf32, #tpu.memory_space<vmem>>, vector<1x128xf32>
    %125 = vector.broadcast %124 : vector<1x128xf32> to vector<16x128xf32>
    %126 = arith.addf %123, %125 : vector<16x128xf32>
    %127 = arith.truncf %126 : vector<16x128xf32> to vector<16x128xbf16>
    %c0_43 = arith.constant 0 : index
    %c0_44 = arith.constant 0 : index
    %128 = vector.load %arg11[%c0_43, %c0_44] : memref<16x128xbf16, #tpu.memory_space<vmem>>, vector<16x128xbf16>
    tpu.vector_store %arg11[%c0_43, %c0_44], %127 {strides = array<i32>} : memref<16x128xbf16, #tpu.memory_space<vmem>>, vector<16x128xbf16>,
    return
  }
  func.func @transform_0(%arg0: i32) -> (i32, i32) {
    %c0_i32 = arith.constant 0 : i32
    %c0_i32_0 = arith.constant 0 : i32
    %c0_i32_1 = arith.constant 0 : i32
    return %c0_i32, %c0_i32_0 : i32, i32
  }
  func.func @transform_1(%arg0: i32) -> (i32, i32) {
    %c0_i32 = arith.constant 0 : i32
    %c0_i32_0 = arith.constant 0 : i32
    %c0_i32_1 = arith.constant 0 : i32
    return %c0_i32, %c0_i32_0 : i32, i32
  }
  func.func @transform_2(%arg0: i32) -> (i32, i32) {
    %c0_i32 = arith.constant 0 : i32
    %c0_i32_0 = arith.constant 0 : i32
    %c0_i32_1 = arith.constant 0 : i32
    return %c0_i32, %c0_i32_0 : i32, i32
  }
  func.func @transform_3(%arg0: i32) -> (i32, i32) {
    %c0_i32 = arith.constant 0 : i32
    %c0_i32_0 = arith.constant 0 : i32
    return %arg0, %c0_i32 : i32, i32
  }
  func.func @transform_4(%arg0: i32) -> (i32, i32) {
    %c0_i32 = arith.constant 0 : i32
    %c0_i32_0 = arith.constant 0 : i32
    return %arg0, %c0_i32 : i32, i32
  }
  func.func @transform_5(%arg0: i32) -> (i32, i32) {
    %c0_i32 = arith.constant 0 : i32
    %c0_i32_0 = arith.constant 0 : i32
    return %arg0, %c0_i32 : i32, i32
  }
  func.func @transform_6(%arg0: i32) -> (i32, i32) {
    %c0_i32 = arith.constant 0 : i32
    %c0_i32_0 = arith.constant 0 : i32
    %c0_i32_1 = arith.constant 0 : i32
    return %c0_i32, %c0_i32_0 : i32, i32
  }
  func.func @transform_7(%arg0: i32) -> (i32, i32) {
    %c0_i32 = arith.constant 0 : i32
    %c0_i32_0 = arith.constant 0 : i32
    %c0_i32_1 = arith.constant 0 : i32
    return %c0_i32, %c0_i32_0 : i32, i32
  }
  func.func @transform_8(%arg0: i32) -> (i32, i32) {
    %c0_i32 = arith.constant 0 : i32
    %c0_i32_0 = arith.constant 0 : i32
    %c0_i32_1 = arith.constant 0 : i32
    return %c0_i32, %c0_i32_0 : i32, i32
  }
  func.func @transform_9(%arg0: i32) -> (i32, i32) {
    %c0_i32 = arith.constant 0 : i32
    %c0_i32_0 = arith.constant 0 : i32
    %c0_i32_1 = arith.constant 0 : i32
    return %c0_i32, %c0_i32_0 : i32, i32
  }
  func.func @transform_10(%arg0: i32) -> (i32, i32) {
    %c0_i32 = arith.constant 0 : i32
    %c0_i32_0 = arith.constant 0 : i32
    return %arg0, %c0_i32 : i32, i32
  }
}

module attributes {stable_mosaic.version = 11 : i64} {
  func.func @_fp_kernel(%arg0: i32, %arg1: memref<3x128xf32, #tpu.memory_space<vmem>>, %arg2: memref<1x128xi32, #tpu.memory_space<vmem>>, %arg3: memref<128x128xbf16, #tpu.memory_space<vmem>>, %arg4: memref<16x3xf32, #tpu.memory_space<vmem>>, %arg5: memref<16x1xi32, #tpu.memory_space<vmem>>, %arg6: memref<16x8xbf16, #tpu.memory_space<vmem>>, %arg7: memref<8x128xbf16, #tpu.memory_space<vmem>>, %arg8: memref<1x128xf32, #tpu.memory_space<vmem>>, %arg9: memref<128x128xbf16, #tpu.memory_space<vmem>>, %arg10: memref<1x128xf32, #tpu.memory_space<vmem>>, %arg11: memref<16x128xbf16, #tpu.memory_space<vmem>>) attributes {dimension_semantics = [#tpu.dimension_semantics<parallel>], iteration_bounds = array<i64: 1>, scalar_prefetch = 0 : i64, scratch_operands = 0 : i64, tpu.core_type = #tpu.core_type<tc>, window_params = [{pipeline_mode = #tpu.pipeline_mode<synchronous>, transform_indices = @transform_0, window_bounds = array<i64: 3, 128>}, {pipeline_mode = #tpu.pipeline_mode<synchronous>, transform_indices = @transform_1, window_bounds = array<i64: 1, 128>}, {pipeline_mode = #tpu.pipeline_mode<synchronous>, transform_indices = @transform_2, window_bounds = array<i64: 128, 128>}, {transform_indices = @transform_3, window_bounds = array<i64: 16, 3>}, {transform_indices = @transform_4, window_bounds = array<i64: 16, 1>}, {transform_indices = @transform_5, window_bounds = array<i64: 16, 8>}, {pipeline_mode = #tpu.pipeline_mode<synchronous>, transform_indices = @transform_6, window_bounds = array<i64: 8, 128>}, {pipeline_mode = #tpu.pipeline_mode<synchronous>, transform_indices = @transform_7, window_bounds = array<i64: 1, 128>}, {pipeline_mode = #tpu.pipeline_mode<synchronous>, transform_indices = @transform_8, window_bounds = array<i64: 128, 128>}, {pipeline_mode = #tpu.pipeline_mode<synchronous>, transform_indices = @transform_9, window_bounds = array<i64: 1, 128>}, {transform_indices = @transform_10, window_bounds = array<i64: 16, 128>}]} {
    %c0 = arith.constant 0 : index
    %c0_0 = arith.constant 0 : index
    %0 = vector.load %arg1[%c0, %c0_0] : memref<3x128xf32, #tpu.memory_space<vmem>>, vector<3x128xf32>
    %c0_1 = arith.constant 0 : index
    %c0_2 = arith.constant 0 : index
    %1 = vector.load %arg2[%c0_1, %c0_2] : memref<1x128xi32, #tpu.memory_space<vmem>>, vector<1x128xi32>
    %c0_3 = arith.constant 0 : index
    %c0_4 = arith.constant 0 : index
    %2 = vector.load %arg4[%c0_3, %c0_4] : memref<16x3xf32, #tpu.memory_space<vmem>>, vector<16x3xf32>
    %c0_5 = arith.constant 0 : index
    %c0_6 = arith.constant 0 : index
    %3 = vector.load %arg5[%c0_5, %c0_6] : memref<16x1xi32, #tpu.memory_space<vmem>>, vector<16x1xi32>
    %4 = vector.extract_strided_slice %2 {offsets = [0, 0], sizes = [16, 1], strides = [1, 1]} : vector<16x3xf32> to vector<16x1xf32>
    %5 = vector.extract_strided_slice %0 {offsets = [0, 0], sizes = [1, 128], strides = [1, 1]} : vector<3x128xf32> to vector<1x128xf32>
    %6 = vector.broadcast %4 : vector<16x1xf32> to vector<16x128xf32>
    %7 = vector.broadcast %5 : vector<1x128xf32> to vector<16x128xf32>
    %8 = arith.mulf %6, %7 : vector<16x128xf32>
    %9 = vector.extract_strided_slice %2 {offsets = [0, 1], sizes = [16, 1], strides = [1, 1]} : vector<16x3xf32> to vector<16x1xf32>
    %10 = vector.extract_strided_slice %0 {offsets = [1, 0], sizes = [1, 128], strides = [1, 1]} : vector<3x128xf32> to vector<1x128xf32>
    %11 = vector.broadcast %9 : vector<16x1xf32> to vector<16x128xf32>
    %12 = vector.broadcast %10 : vector<1x128xf32> to vector<16x128xf32>
    %13 = arith.mulf %11, %12 : vector<16x128xf32>
    %14 = arith.addf %8, %13 : vector<16x128xf32>
    %15 = vector.extract_strided_slice %2 {offsets = [0, 2], sizes = [16, 1], strides = [1, 1]} : vector<16x3xf32> to vector<16x1xf32>
    %16 = vector.extract_strided_slice %0 {offsets = [2, 0], sizes = [1, 128], strides = [1, 1]} : vector<3x128xf32> to vector<1x128xf32>
    %17 = vector.broadcast %15 : vector<16x1xf32> to vector<16x128xf32>
    %18 = vector.broadcast %16 : vector<1x128xf32> to vector<16x128xf32>
    %19 = arith.mulf %17, %18 : vector<16x128xf32>
    %20 = arith.addf %14, %19 : vector<16x128xf32>
    %21 = arith.mulf %2, %2 : vector<16x3xf32>
    %cst = arith.constant dense<0.000000e+00> : vector<16xf32>
    %22 = vector.multi_reduction <add>, %21, %cst [1] : vector<16x3xf32> to vector<16xf32>
    %23 = vector.shape_cast %22 : vector<16xf32> to vector<16x1xf32>
    %24 = arith.mulf %0, %0 : vector<3x128xf32>
    %cst_7 = arith.constant dense<0.000000e+00> : vector<128xf32>
    %25 = vector.multi_reduction <add>, %24, %cst_7 [0] : vector<3x128xf32> to vector<128xf32>
    %26 = vector.shape_cast %25 : vector<128xf32> to vector<1x128xf32>
    %27 = vector.broadcast %23 : vector<16x1xf32> to vector<16x128xf32>
    %28 = vector.broadcast %26 : vector<1x128xf32> to vector<16x128xf32>
    %29 = arith.addf %27, %28 : vector<16x128xf32>
    %cst_8 = arith.constant 2.000000e+00 : f32
    %30 = vector.broadcast %cst_8 : f32 to vector<16x128xf32>
    %31 = arith.mulf %30, %20 : vector<16x128xf32>
    %32 = arith.subf %29, %31 : vector<16x128xf32>
    %cst_9 = arith.constant 0.000000e+00 : f32
    %33 = vector.broadcast %cst_9 : f32 to vector<16x128xf32>
    %34 = arith.maximumf %32, %33 : vector<16x128xf32>
    %35 = vector.broadcast %3 : vector<16x1xi32> to vector<16x128xi32>
    %36 = vector.broadcast %1 : vector<1x128xi32> to vector<16x128xi32>
    %37 = arith.cmpi eq, %35, %36 : vector<16x128xi32>
    %cst_10 = arith.constant 1.000000e+30 : f32
    %38 = vector.broadcast %cst_10 : f32 to vector<16x128xf32>
    %39 = arith.select %37, %34, %38 : vector<16x128xi1>, vector<16x128xf32>
    %cst_11 = arith.constant 0.000000e+00 : bf16
    %40 = vector.broadcast %cst_11 : bf16 to vector<16x128xbf16>
    %cst_12 = arith.constant 0.000000e+00 : f32
    %41 = vector.broadcast %cst_12 : f32 to vector<16x1xf32>
    %cst_13 = arith.constant 1.000000e+30 : f32
    %c0_i32 = arith.constant 0 : i32
    %cst_14 = arith.constant dense<0x7F800000> : vector<16xf32>
    %42 = vector.multi_reduction <minimumf>, %39, %cst_14 [1] : vector<16x128xf32> to vector<16xf32>
    %43 = vector.shape_cast %42 : vector<16xf32> to vector<16x1xf32>
    %cst_15 = arith.constant 1.000000e+29 : f32
    %44 = vector.broadcast %cst_15 : f32 to vector<16x1xf32>
    %45 = arith.cmpf olt, %43, %44 : vector<16x1xf32>
    %cst_16 = arith.constant 1.000000e-16 : f32
    %46 = vector.broadcast %cst_16 : f32 to vector<16x1xf32>
    %47 = arith.maximumf %43, %46 : vector<16x1xf32>
    %48 = tpu.reciprocal %47 {approx = true} : vector<16x1xf32> -> vector<16x1xf32>
    %cst_17 = arith.constant 0.000000e+00 : f32
    %49 = vector.broadcast %cst_17 : f32 to vector<16x1xf32>
    %50 = arith.select %45, %48, %49 : vector<16x1xi1>, vector<16x1xf32>
    %51 = vector.broadcast %43 : vector<16x1xf32> to vector<16x128xf32>
    %52 = arith.cmpf ole, %39, %51 : vector<16x128xf32>
    %53 = arith.truncf %50 : vector<16x1xf32> to vector<16x1xbf16>
    %54 = arith.extui %52 : vector<16x128xi1> to vector<16x128xi32>
    %55 = arith.sitofp %54 : vector<16x128xi32> to vector<16x128xf32>
    %56 = arith.truncf %55 : vector<16x128xf32> to vector<16x128xbf16>
    %57 = vector.broadcast %53 : vector<16x1xbf16> to vector<16x128xbf16>
    %58 = arith.mulf %57, %56 : vector<16x128xbf16>
    %59 = arith.addf %40, %58 : vector<16x128xbf16>
    %60 = arith.addf %41, %50 : vector<16x1xf32>
    %61 = vector.broadcast %cst_13 : f32 to vector<16x128xf32>
    %62 = arith.select %52, %61, %39 : vector<16x128xi1>, vector<16x128xf32>
    %c1_i32 = arith.constant 1 : i32
    %cst_18 = arith.constant dense<0x7F800000> : vector<16xf32>
    %63 = vector.multi_reduction <minimumf>, %62, %cst_18 [1] : vector<16x128xf32> to vector<16xf32>
    %64 = vector.shape_cast %63 : vector<16xf32> to vector<16x1xf32>
    %cst_19 = arith.constant 1.000000e+29 : f32
    %65 = vector.broadcast %cst_19 : f32 to vector<16x1xf32>
    %66 = arith.cmpf olt, %64, %65 : vector<16x1xf32>
    %cst_20 = arith.constant 1.000000e-16 : f32
    %67 = vector.broadcast %cst_20 : f32 to vector<16x1xf32>
    %68 = arith.maximumf %64, %67 : vector<16x1xf32>
    %69 = tpu.reciprocal %68 {approx = true} : vector<16x1xf32> -> vector<16x1xf32>
    %cst_21 = arith.constant 0.000000e+00 : f32
    %70 = vector.broadcast %cst_21 : f32 to vector<16x1xf32>
    %71 = arith.select %66, %69, %70 : vector<16x1xi1>, vector<16x1xf32>
    %72 = vector.broadcast %64 : vector<16x1xf32> to vector<16x128xf32>
    %73 = arith.cmpf ole, %62, %72 : vector<16x128xf32>
    %74 = arith.truncf %71 : vector<16x1xf32> to vector<16x1xbf16>
    %75 = arith.extui %73 : vector<16x128xi1> to vector<16x128xi32>
    %76 = arith.sitofp %75 : vector<16x128xi32> to vector<16x128xf32>
    %77 = arith.truncf %76 : vector<16x128xf32> to vector<16x128xbf16>
    %78 = vector.broadcast %74 : vector<16x1xbf16> to vector<16x128xbf16>
    %79 = arith.mulf %78, %77 : vector<16x128xbf16>
    %80 = arith.addf %59, %79 : vector<16x128xbf16>
    %81 = arith.addf %60, %71 : vector<16x1xf32>
    %82 = vector.broadcast %cst_13 : f32 to vector<16x128xf32>
    %83 = arith.select %73, %82, %62 : vector<16x128xi1>, vector<16x128xf32>
    %c2_i32 = arith.constant 2 : i32
    %cst_22 = arith.constant dense<0x7F800000> : vector<16xf32>
    %84 = vector.multi_reduction <minimumf>, %83, %cst_22 [1] : vector<16x128xf32> to vector<16xf32>
    %85 = vector.shape_cast %84 : vector<16xf32> to vector<16x1xf32>
    %cst_23 = arith.constant 1.000000e+29 : f32
    %86 = vector.broadcast %cst_23 : f32 to vector<16x1xf32>
    %87 = arith.cmpf olt, %85, %86 : vector<16x1xf32>
    %cst_24 = arith.constant 1.000000e-16 : f32
    %88 = vector.broadcast %cst_24 : f32 to vector<16x1xf32>
    %89 = arith.maximumf %85, %88 : vector<16x1xf32>
    %90 = tpu.reciprocal %89 {approx = true} : vector<16x1xf32> -> vector<16x1xf32>
    %cst_25 = arith.constant 0.000000e+00 : f32
    %91 = vector.broadcast %cst_25 : f32 to vector<16x1xf32>
    %92 = arith.select %87, %90, %91 : vector<16x1xi1>, vector<16x1xf32>
    %93 = vector.broadcast %85 : vector<16x1xf32> to vector<16x128xf32>
    %94 = arith.cmpf ole, %83, %93 : vector<16x128xf32>
    %95 = arith.truncf %92 : vector<16x1xf32> to vector<16x1xbf16>
    %96 = arith.extui %94 : vector<16x128xi1> to vector<16x128xi32>
    %97 = arith.sitofp %96 : vector<16x128xi32> to vector<16x128xf32>
    %98 = arith.truncf %97 : vector<16x128xf32> to vector<16x128xbf16>
    %99 = vector.broadcast %95 : vector<16x1xbf16> to vector<16x128xbf16>
    %100 = arith.mulf %99, %98 : vector<16x128xbf16>
    %101 = arith.addf %80, %100 : vector<16x128xbf16>
    %102 = arith.addf %81, %92 : vector<16x1xf32>
    %103 = vector.broadcast %cst_13 : f32 to vector<16x128xf32>
    %104 = arith.select %94, %103, %83 : vector<16x128xi1>, vector<16x128xf32>
    %c0_26 = arith.constant 0 : index
    %c0_27 = arith.constant 0 : index
    %105 = vector.load %arg3[%c0_26, %c0_27] : memref<128x128xbf16, #tpu.memory_space<vmem>>, vector<128x128xbf16>
    %cst_28 = arith.constant dense<0.000000e+00> : vector<16x128xf32>
    %106 = tpu.matmul %101, %105, %cst_28 {dimension_numbers = #tpu.dot_dimension_numbers<[1], [0], [0], [1], [0, 0, 1, 1], [], []>} : vector<16x128xbf16>, vector<128x128xbf16>, vector<16x128xf32> -> vector<16x128xf32>
    %cst_29 = arith.constant 9.99999968E-21 : f32
    %107 = vector.broadcast %cst_29 : f32 to vector<16x1xf32>
    %108 = arith.maximumf %102, %107 : vector<16x1xf32>
    %109 = tpu.reciprocal %108 {approx = true} : vector<16x1xf32> -> vector<16x1xf32>
    %110 = vector.broadcast %109 : vector<16x1xf32> to vector<16x128xf32>
    %111 = arith.mulf %106, %110 : vector<16x128xf32>
    %c0_30 = arith.constant 0 : index
    %c0_31 = arith.constant 0 : index
    %112 = vector.load %arg6[%c0_30, %c0_31] : memref<16x8xbf16, #tpu.memory_space<vmem>>, vector<16x8xbf16>
    %c0_32 = arith.constant 0 : index
    %c0_33 = arith.constant 0 : index
    %113 = vector.load %arg7[%c0_32, %c0_33] : memref<8x128xbf16, #tpu.memory_space<vmem>>, vector<8x128xbf16>
    %cst_34 = arith.constant dense<0.000000e+00> : vector<16x128xf32>
    %114 = tpu.matmul %112, %113, %cst_34 {dimension_numbers = #tpu.dot_dimension_numbers<[1], [0], [0], [1], [0, 0, 1, 1], [], []>} : vector<16x8xbf16>, vector<8x128xbf16>, vector<16x128xf32> -> vector<16x128xf32>
    %115 = arith.addf %111, %114 : vector<16x128xf32>
    %c0_35 = arith.constant 0 : index
    %c0_36 = arith.constant 0 : index
    %116 = vector.load %arg8[%c0_35, %c0_36] : memref<1x128xf32, #tpu.memory_space<vmem>>, vector<1x128xf32>
    %117 = vector.broadcast %116 : vector<1x128xf32> to vector<16x128xf32>
    %118 = arith.addf %115, %117 : vector<16x128xf32>
    %cst_37 = arith.constant 0.000000e+00 : f32
    %119 = vector.broadcast %cst_37 : f32 to vector<16x128xf32>
    %120 = arith.maximumf %118, %119 : vector<16x128xf32>
    %c0_38 = arith.constant 0 : index
    %c0_39 = arith.constant 0 : index
    %121 = vector.load %arg9[%c0_38, %c0_39] : memref<128x128xbf16, #tpu.memory_space<vmem>>, vector<128x128xbf16>
    %122 = arith.truncf %120 : vector<16x128xf32> to vector<16x128xbf16>
    %cst_40 = arith.constant dense<0.000000e+00> : vector<16x128xf32>
    %123 = tpu.matmul %122, %121, %cst_40 {dimension_numbers = #tpu.dot_dimension_numbers<[1], [0], [0], [1], [0, 0, 1, 1], [], []>} : vector<16x128xbf16>, vector<128x128xbf16>, vector<16x128xf32> -> vector<16x128xf32>
    %c0_41 = arith.constant 0 : index
    %c0_42 = arith.constant 0 : index
    %124 = vector.load %arg10[%c0_41, %c0_42] : memref<1x128xf32, #tpu.memory_space<vmem>>, vector<1x128xf32>
    %125 = vector.broadcast %124 : vector<1x128xf32> to vector<16x128xf32>
    %126 = arith.addf %123, %125 : vector<16x128xf32>
    %127 = arith.truncf %126 : vector<16x128xf32> to vector<16x128xbf16>
    %c0_43 = arith.constant 0 : index
    %c0_44 = arith.constant 0 : index
    %128 = vector.load %arg11[%c0_43, %c0_44] : memref<16x128xbf16, #tpu.memory_space<vmem>>, vector<16x128xbf16>
    tpu.vector_store %arg11[%c0_43, %c0_44], %127 {strides = array<i32>} : memref<16x128xbf16, #tpu.memory_space<vmem>>, vector<16x128xbf16>,
    return
  }
  func.func @transform_0(%arg0: i32) -> (i32, i32) {
    %c0_i32 = arith.constant 0 : i32
    %c0_i32_0 = arith.constant 0 : i32
    %c0_i32_1 = arith.constant 0 : i32
    return %c0_i32, %c0_i32_0 : i32, i32
  }
  func.func @transform_1(%arg0: i32) -> (i32, i32) {
    %c0_i32 = arith.constant 0 : i32
    %c0_i32_0 = arith.constant 0 : i32
    %c0_i32_1 = arith.constant 0 : i32
    return %c0_i32, %c0_i32_0 : i32, i32
  }
  func.func @transform_2(%arg0: i32) -> (i32, i32) {
    %c0_i32 = arith.constant 0 : i32
    %c0_i32_0 = arith.constant 0 : i32
    %c0_i32_1 = arith.constant 0 : i32
    return %c0_i32, %c0_i32_0 : i32, i32
  }
  func.func @transform_3(%arg0: i32) -> (i32, i32) {
    %c0_i32 = arith.constant 0 : i32
    %c0_i32_0 = arith.constant 0 : i32
    return %arg0, %c0_i32 : i32, i32
  }
  func.func @transform_4(%arg0: i32) -> (i32, i32) {
    %c0_i32 = arith.constant 0 : i32
    %c0_i32_0 = arith.constant 0 : i32
    return %arg0, %c0_i32 : i32, i32
  }
  func.func @transform_5(%arg0: i32) -> (i32, i32) {
    %c0_i32 = arith.constant 0 : i32
    %c0_i32_0 = arith.constant 0 : i32
    return %arg0, %c0_i32 : i32, i32
  }
  func.func @transform_6(%arg0: i32) -> (i32, i32) {
    %c0_i32 = arith.constant 0 : i32
    %c0_i32_0 = arith.constant 0 : i32
    %c0_i32_1 = arith.constant 0 : i32
    return %c0_i32, %c0_i32_0 : i32, i32
  }
  func.func @transform_7(%arg0: i32) -> (i32, i32) {
    %c0_i32 = arith.constant 0 : i32
    %c0_i32_0 = arith.constant 0 : i32
    %c0_i32_1 = arith.constant 0 : i32
    return %c0_i32, %c0_i32_0 : i32, i32
  }
  func.func @transform_8(%arg0: i32) -> (i32, i32) {
    %c0_i32 = arith.constant 0 : i32
    %c0_i32_0 = arith.constant 0 : i32
    %c0_i32_1 = arith.constant 0 : i32
    return %c0_i32, %c0_i32_0 : i32, i32
  }
  func.func @transform_9(%arg0: i32) -> (i32, i32) {
    %c0_i32 = arith.constant 0 : i32
    %c0_i32_0 = arith.constant 0 : i32
    %c0_i32_1 = arith.constant 0 : i32
    return %c0_i32, %c0_i32_0 : i32, i32
  }
  func.func @transform_10(%arg0: i32) -> (i32, i32) {
    %c0_i32 = arith.constant 0 : i32
    %c0_i32_0 = arith.constant 0 : i32
    return %arg0, %c0_i32 : i32, i32
  }
}

</mosaic_0001>

<llo_original>
// kernel: tpu_custom_call.1
$region0: #{tpu_custom_call.1}
  #allocation0 [shape = 'u32[]', space=smem, size = 0x4, offset = 0x4, fixed_abs, tag = 'smem constant byte address 0x4 - core index']
  #allocation1 [shape = 'u32[144,128]{1,0:T(1,128)}', space=vmem, size = 0x12000, scoped, tag = 'internal scratch']
  %s0 = inlined_call_operand.vmem [shape: f32[3,128], index: 0, kind: input, shape index: {}]
  %s1 = inlined_call_operand.vmem [shape: s32[1,128], index: 1, kind: input, shape index: {}]
  %s2 = inlined_call_operand.hbm [shape: bf16[128,128], index: 2, kind: input, shape index: {}]
  %s3 = inlined_call_operand.vmem [shape: f32[16,3], index: 3, kind: input, shape index: {}]
  %s4 = inlined_call_operand.vmem [shape: s32[16,1], index: 4, kind: input, shape index: {}]
  %s5 = inlined_call_operand.vmem [shape: bf16[16,8], index: 5, kind: input, shape index: {}]
  %s6 = inlined_call_operand.vmem [shape: bf16[8,128], index: 6, kind: input, shape index: {}]
  %s7 = inlined_call_operand.vmem [shape: f32[1,128], index: 7, kind: input, shape index: {}]
  %s8 = inlined_call_operand.hbm [shape: bf16[128,128], index: 8, kind: input, shape index: {}]
  %s9 = inlined_call_operand.vmem [shape: f32[1,128], index: 9, kind: input, shape index: {}]
  %s10 = inlined_call_operand.hbm [shape: bf16[16,128], index: 10, kind: output, shape index: {}]
  %s11 = sld [smem:[#allocation0]]
  $region58: #{tpu_custom_call.1} parent=0
    _
  %s13 = ssub.s32 1, %s11
  %s14 = scalar_select 0, %s13, %s11
  $region1: #{tpu_custom_call.1} parent=0
    #allocation2 [shape = 'u8[32768]{0}', space=vmem, size = 0x8000, scoped, tag = 'input window, operand 2, single buffered']
    #allocation3 [shape = 's32[1]{0}', space=sflag, size = 0x4, scoped, tag = 'scoped memory for tpu_custom_call.1']
    #allocation4 [shape = 's32[1]{0}', space=sflag, size = 0x4, scoped, tag = 'scoped memory for tpu_custom_call.1']
    #allocation5 [shape = 'u8[32768]{0}', space=vmem, size = 0x8000, scoped, tag = 'input window, operand 8, single buffered']
    #allocation6 [shape = 's32[1]{0}', space=sflag, size = 0x4, scoped, tag = 'scoped memory for tpu_custom_call.1']
    #allocation7 [shape = 'u8[4096]{0}', space=vmem, size = 0x1000, scoped, tag = 'output window, operand 0, single buffered']
    %15 = vsyncpa [#allocation3], 0
    %16 = vsyncpa [#allocation6], 0
    %17 = vsyncpa [#allocation4], 0
    // Predicated region
    $region2: #{tpu_custom_call.1} parent=1 // pred_check
      _
    $region3: #{tpu_custom_call.1} parent=1 // pred_check_branch
      %19 = sbr.rel (0) target = $region5
    $region4: #{tpu_custom_call.1} parent=1 // pred_region
      _
    $region5: #{tpu_custom_call.1} parent=1 // pred_fallthru
      _
    // Predicated region
    $region6: #{tpu_custom_call.1} parent=1 // pred_check
      _
    $region7: #{tpu_custom_call.1} parent=1 // pred_check_branch
      %21 = sbr.rel (0) target = $region9
    $region8: #{tpu_custom_call.1} parent=1 // pred_region
      _
    $region9: #{tpu_custom_call.1} parent=1 // pred_fallthru
      _
    // Predicated region
    $region10: #{tpu_custom_call.1} parent=1 // pred_check
      _
    $region11: #{tpu_custom_call.1} parent=1 // pred_check_branch
      %23 = sbr.rel (0) target = $region13
    $region12: #{tpu_custom_call.1} parent=1 // pred_region
      %s25 = ssub.s32 1024, 1024
      %26 = vsyncadd [#allocation3], %s25
      %s27 = sshll.u32 [#allocation2], 4
      %s28 = int_to_ptr.vmem [resolvable:$true] %s27
      %33 = dma.hbm_to_vmem [thread:$0]  %s2, 1024, %s28, [#allocation3], 64, 64, 4
    $region13: #{tpu_custom_call.1} parent=1 // pred_fallthru
      _
    // Predicated region
    $region14: #{tpu_custom_call.1} parent=1 // pred_check
      _
    $region15: #{tpu_custom_call.1} parent=1 // pred_check_branch
      %35 = sbr.rel (0) target = $region17
    $region16: #{tpu_custom_call.1} parent=1 // pred_region
      _
    $region17: #{tpu_custom_call.1} parent=1 // pred_fallthru
      _
    // Predicated region
    $region18: #{tpu_custom_call.1} parent=1 // pred_check
      _
    $region19: #{tpu_custom_call.1} parent=1 // pred_check_branch
      %37 = sbr.rel (0) target = $region21
    $region20: #{tpu_custom_call.1} parent=1 // pred_region
      _
    $region21: #{tpu_custom_call.1} parent=1 // pred_fallthru
      _
    // Predicated region
    $region22: #{tpu_custom_call.1} parent=1 // pred_check
      _
    $region23: #{tpu_custom_call.1} parent=1 // pred_check_branch
      %39 = sbr.rel (0) target = $region25
    $region24: #{tpu_custom_call.1} parent=1 // pred_region
      _
    $region25: #{tpu_custom_call.1} parent=1 // pred_fallthru
      _
    // Predicated region
    $region26: #{tpu_custom_call.1} parent=1 // pred_check
      _
    $region27: #{tpu_custom_call.1} parent=1 // pred_check_branch
      %41 = sbr.rel (0) target = $region29
    $region28: #{tpu_custom_call.1} parent=1 // pred_region
      _
    $region29: #{tpu_custom_call.1} parent=1 // pred_fallthru
      _
    // Predicated region
    $region30: #{tpu_custom_call.1} parent=1 // pred_check
      _
    $region31: #{tpu_custom_call.1} parent=1 // pred_check_branch
      %43 = sbr.rel (0) target = $region33
    $region32: #{tpu_custom_call.1} parent=1 // pred_region
      _
    $region33: #{tpu_custom_call.1} parent=1 // pred_fallthru
      _
    // Predicated region
    $region34: #{tpu_custom_call.1} parent=1 // pred_check
      _
    $region35: #{tpu_custom_call.1} parent=1 // pred_check_branch
      %45 = sbr.rel (0) target = $region37
    $region36: #{tpu_custom_call.1} parent=1 // pred_region
      %s47 = ssub.s32 1024, 1024
      %48 = vsyncadd [#allocation6], %s47
      %s49 = sshll.u32 [#allocation5], 4
      %s50 = int_to_ptr.vmem [resolvable:$true] %s49
      %55 = dma.hbm_to_vmem [thread:$0]  %s8, 1024, %s50, [#allocation6], 64, 64, 4
    $region37: #{tpu_custom_call.1} parent=1 // pred_fallthru
      _
    // Predicated region
    $region38: #{tpu_custom_call.1} parent=1 // pred_check
      _
    $region39: #{tpu_custom_call.1} parent=1 // pred_check_branch
      %57 = sbr.rel (0) target = $region41
    $region40: #{tpu_custom_call.1} parent=1 // pred_region
      _
    $region41: #{tpu_custom_call.1} parent=1 // pred_fallthru
      _
    // Predicated region
    $region42: #{tpu_custom_call.1} parent=1 // pred_check
      _
    $region43: #{tpu_custom_call.1} parent=1 // pred_check_branch
      %59 = sbr.rel (0) target = $region45
    $region44: #{tpu_custom_call.1} parent=1 // pred_region
      %60 = dma.done [#allocation3], 1024
    $region45: #{tpu_custom_call.1} parent=1 // pred_fallthru
      _
    // Predicated region
    $region46: #{tpu_custom_call.1} parent=1 // pred_check
      _
    $region47: #{tpu_custom_call.1} parent=1 // pred_check_branch
      %62 = sbr.rel (0) target = $region49
    $region48: #{tpu_custom_call.1} parent=1 // pred_region
      %63 = dma.done [#allocation6], 1024
    $region49: #{tpu_custom_call.1} parent=1 // pred_fallthru
      _
    %v65 = vld [vmem:[%s0] sm:$0x7]
    %v66 = vld [vmem:[%s1] sm:$0x1]
    %v67 = vld [vmem:[%s3] sm:$0xff]
    %v68 = vld [vmem:[%s3 + $0x8] sm:$0xff]
    %v69 = vld [vmem:[%s4] sm:$0xff]
    %v70 = vld [vmem:[%s4 + $0x8] sm:$0xff]
    %72 = vset.pattern.permute.xlu0 0
    %73 = vperm.xlu0 %72, %v67
    %v74 = vpop.permute.xlu0 %73
    %77 = vset.pattern.permute.xlu0 0
    %78 = vperm.xlu0 %77, %v68
    %v79 = vpop.permute.xlu0 %78
    %v81 = vlaneseq
    %v82 = vshrl.u32 %v81, 7
    %v83 = vsub.s32 0, %v82
    %v84 = vrot.slane %v65, %v83
    %v85 = vmul.f32 %v74, %v84
    %v86 = vmul.f32 %v79, %v84
    %87 = vset.pattern.permute.xlu0 1
    %88 = vperm.xlu0 %87, %v67
    %v89 = vpop.permute.xlu0 %88
    %91 = vset.pattern.permute.xlu0 1
    %92 = vperm.xlu0 %91, %v68
    %v93 = vpop.permute.xlu0 %92
    %v95 = vlaneseq
    %v96 = vshrl.u32 %v95, 7
    %v97 = vsub.s32 1, %v96
    %v98 = vrot.slane %v65, %v97
    %v99 = vmul.f32 %v89, %v98
    %v100 = vmul.f32 %v93, %v98
    %v101 = vadd.f32 %v85, %v99
    %v102 = vadd.f32 %v86, %v100
    %103 = vset.pattern.permute.xlu0 2
    %104 = vperm.xlu0 %103, %v67
    %v105 = vpop.permute.xlu0 %104
    %107 = vset.pattern.permute.xlu0 2
    %108 = vperm.xlu0 %107, %v68
    %v109 = vpop.permute.xlu0 %108
    %v111 = vlaneseq
    %v112 = vshrl.u32 %v111, 7
    %v113 = vsub.s32 2, %v112
    %v114 = vrot.slane %v65, %v113
    %v115 = vmul.f32 %v105, %v114
    %v116 = vmul.f32 %v109, %v114
    %v117 = vadd.f32 %v101, %v115
    %v118 = vadd.f32 %v102, %v116
    %v119 = vmul.f32 %v67, %v67
    %v120 = vmul.f32 %v68, %v68
    %vm121 = vcmask 23552
    %v122 = vsel %vm121, %v119, 0.0
    %123 = vadd.xlane.f32.xlu0 %v122
    %v124 = vpop.xlane.xlu0 %123
    %v125 = vsel %vm121, %v120, 0.0
    %126 = vadd.xlane.f32.xlu0 %v125
    %v127 = vpop.xlane.xlu0 %126
    %v128 = vmul.f32 %v65, %v65
    %vm129 = vcmask 1042432
    %v130 = vsel %vm129, %v128, 0.0
    %v131 = vrot.slane %v130, 4
    %v132 = vadd.f32 %v130, %v131
    %v133 = vrot.slane %v132, 2
    %v134 = vadd.f32 %v132, %v133
    %v135 = vrot.slane %v134, 1
    %v136 = vadd.f32 %v134, %v135
    %v137 = vadd.f32 %v124, %v136
    %v138 = vadd.f32 %v127, %v136
    %v139 = vmul.f32 %v117, 2.0
    %v140 = vmul.f32 %v118, 2.0
    %v141 = vsub.f32 %v137, %v139
    %v142 = vsub.f32 %v138, %v140
    %v143 = vmax.f32 %v141, 0.0
    %v144 = vmax.f32 %v142, 0.0
    %145 = vset.pattern.permute.xlu0 0
    %146 = vperm.xlu0 %145, %v69
    %v147 = vpop.permute.xlu0 %146
    %148 = vset.pattern.permute.xlu0 0
    %149 = vperm.xlu0 %148, %v70
    %v150 = vpop.permute.xlu0 %149
    %v151 = vlaneseq
    %v152 = vshrl.u32 %v151, 7
    %v153 = vsub.s32 0, %v152
    %v154 = vrot.slane %v66, %v153
    %vm155 = vcmp.eq.s32.totalorder %v147, %v154
    %vm156 = vcmp.eq.s32.totalorder %v150, %v154
    %v157 = vsel %vm155, %v143, 1e+30
    %v158 = vsel %vm156, %v144, 1e+30
    %159 = vmin.xlane.f32.xlu0 %v157
    %v160 = vpop.xlane.xlu0 %159
    %161 = vmin.xlane.f32.xlu0 %v158
    %v162 = vpop.xlane.xlu0 %161
    %vm163 = vcmp.lt.f32.partialorder %v160, 1e+29
    %vm164 = vcmp.lt.f32.partialorder %v162, 1e+29
    %v165 = vmax.f32 %v160, 1e-16
    %v166 = vmax.f32 %v162, 1e-16
    %v167 = vrcp.pop %v165
    %v168 = vrcp.pop %v166
    %v169 = vsel %vm163, %v167, 0.0
    %v170 = vsel %vm164, %v168, 0.0
    %vm171 = vcmp.le.f32.partialorder %v157, %v160
    %vm172 = vcmp.le.f32.partialorder %v158, %v162
    %v173 = vpack.c.bf16 %v170, %v169
    %v174 = vsel %vm171, 1, 0
    %v175 = vsel %vm172, 1, 0
    %v176 = vcvt.s32.f32 %v174
    %v177 = vcvt.s32.f32 %v175
    %v178 = vpack.c.bf16 %v177, %v176
    %v179 = vmul.bf16 %v173, %v178
    %v180 = vadd.bf16 %v179, 0
    %v181 = vadd.f32 %v169, 0.0
    %v182 = vadd.f32 %v170, 0.0
    %v183 = vsel %vm171, 1e+30, %v157
    %v184 = vsel %vm172, 1e+30, %v158
    %185 = vmin.xlane.f32.xlu0 %v183
    %v186 = vpop.xlane.xlu0 %185
    %187 = vmin.xlane.f32.xlu0 %v184
    %v188 = vpop.xlane.xlu0 %187
    %vm189 = vcmp.lt.f32.partialorder %v186, 1e+29
    %vm190 = vcmp.lt.f32.partialorder %v188, 1e+29
    %v191 = vmax.f32 %v186, 1e-16
    %v192 = vmax.f32 %v188, 1e-16
    %v193 = vrcp.pop %v191
    %v194 = vrcp.pop %v192
    %v195 = vsel %vm189, %v193, 0.0
    %v196 = vsel %vm190, %v194, 0.0
    %vm197 = vcmp.le.f32.partialorder %v183, %v186
    %vm198 = vcmp.le.f32.partialorder %v184, %v188
    %v199 = vpack.c.bf16 %v196, %v195
    %v200 = vsel %vm197, 1, 0
    %v201 = vsel %vm198, 1, 0
    %v202 = vcvt.s32.f32 %v200
    %v203 = vcvt.s32.f32 %v201
    %v204 = vpack.c.bf16 %v203, %v202
    %v205 = vmul.bf16 %v199, %v204
    %v206 = vadd.bf16 %v180, %v205
    %v207 = vadd.f32 %v181, %v195
    %v208 = vadd.f32 %v182, %v196
    %v209 = vsel %vm197, 1e+30, %v183
    %v210 = vsel %vm198, 1e+30, %v184
    %211 = vmin.xlane.f32.xlu0 %v209
    %v212 = vpop.xlane.xlu0 %211
    %213 = vmin.xlane.f32.xlu0 %v210
    %v214 = vpop.xlane.xlu0 %213
    %vm215 = vcmp.lt.f32.partialorder %v212, 1e+29
    %vm216 = vcmp.lt.f32.partialorder %v214, 1e+29
    %v217 = vmax.f32 %v212, 1e-16
    %v218 = vmax.f32 %v214, 1e-16
    %v219 = vrcp.pop %v217
    %v220 = vrcp.pop %v218
    %v221 = vsel %vm215, %v219, 0.0
    %v222 = vsel %vm216, %v220, 0.0
    %vm223 = vcmp.le.f32.partialorder %v209, %v212
    %vm224 = vcmp.le.f32.partialorder %v210, %v214
    %v225 = vpack.c.bf16 %v222, %v221
    %v226 = vsel %vm223, 1, 0
    %v227 = vsel %vm224, 1, 0
    %v228 = vcvt.s32.f32 %v226
    %v229 = vcvt.s32.f32 %v227
    %v230 = vpack.c.bf16 %v229, %v228
    %v231 = vmul.bf16 %v225, %v230
    %v232 = vadd.bf16 %v206, %v231
    %v233 = vadd.f32 %v207, %v221
    %v234 = vadd.f32 %v208, %v222
    %v235 = vld [vmem:[#allocation2] sm:$0xf]
    %v236 = vld [vmem:[#allocation2 + $0x4] sm:$0xf]
    %v237 = vld [vmem:[#allocation2 + $0x8] sm:$0xf]
    %v238 = vld [vmem:[#allocation2 + $0xc] sm:$0xf]
    %v239 = vld [vmem:[#allocation2 + $0x10] sm:$0xf]
    %v240 = vld [vmem:[#allocation2 + $0x14] sm:$0xf]
    %v241 = vld [vmem:[#allocation2 + $0x18] sm:$0xf]
    %v242 = vld [vmem:[#allocation2 + $0x1c] sm:$0xf]
    %v243 = vld [vmem:[#allocation2 + $0x20] sm:$0xf]
    %v244 = vld [vmem:[#allocation2 + $0x24] sm:$0xf]
    %v245 = vld [vmem:[#allocation2 + $0x28] sm:$0xf]
    %v246 = vld [vmem:[#allocation2 + $0x2c] sm:$0xf]
    %v247 = vld [vmem:[#allocation2 + $0x30] sm:$0xf]
    %v248 = vld [vmem:[#allocation2 + $0x34] sm:$0xf]
    %v249 = vld [vmem:[#allocation2 + $0x38] sm:$0xf]
    %v250 = vld [vmem:[#allocation2 + $0x3c] sm:$0xf]
    %v267 = vunpack.c.l.b16 %v235
    %v268 = vunpack.c.l.b16 %v236
    %v269 = vunpack.c.l.b16 %v237
    %v270 = vunpack.c.l.b16 %v238
    %v271 = vunpack.c.l.b16 %v239
    %v272 = vunpack.c.l.b16 %v240
    %v273 = vunpack.c.l.b16 %v241
    %v274 = vunpack.c.l.b16 %v242
    %v275 = vunpack.c.l.b16 %v243
    %v276 = vunpack.c.l.b16 %v244
    %v277 = vunpack.c.l.b16 %v245
    %v278 = vunpack.c.l.b16 %v246
    %v279 = vunpack.c.l.b16 %v247
    %v280 = vunpack.c.l.b16 %v248
    %v281 = vunpack.c.l.b16 %v249
    %v282 = vunpack.c.l.b16 %v250
    %v283 = vpack.c.b16 %v268, %v267
    %v284 = vpack.c.b16 %v270, %v269
    %v285 = vpack.c.b16 %v272, %v271
    %v286 = vpack.c.b16 %v274, %v273
    %v287 = vpack.c.b16 %v276, %v275
    %v288 = vpack.c.b16 %v278, %v277
    %v289 = vpack.c.b16 %v280, %v279
    %v290 = vpack.c.b16 %v282, %v281
    %299 = vmatprep.subr.bf16.mxu0 0
    %300 = vmatpush1.bf16.msra.mxu0 %v290
    %301 = vmatprep.subr.bf16.mxu0 0
    %302 = vmatpush1.bf16.msra.mxu0 %v289
    %303 = vmatprep.subr.bf16.mxu0 0
    %304 = vmatpush1.bf16.msra.mxu0 %v288
    %305 = vmatprep.subr.bf16.mxu0 0
    %306 = vmatpush1.bf16.msra.mxu0 %v287
    %307 = vmatprep.subr.bf16.mxu0 0
    %308 = vmatpush1.bf16.msra.mxu0 %v286
    %309 = vmatprep.subr.bf16.mxu0 0
    %310 = vmatpush1.bf16.msra.mxu0 %v285
    %311 = vmatprep.subr.bf16.mxu0 0
    %312 = vmatpush1.bf16.msra.mxu0 %v284
    %313 = vmatprep.subr.bf16.mxu0 0
    %314 = vmatpush1.bf16.msra.mxu0 %v283
    %315 = vmatprep.subr.bf16.mxu0 0
    %316 = vmatpush2.bf16.msra.mxu0 0
    %317 = vmatprep.subr.bf16.mxu0 0
    %318 = vmatpush2.bf16.msra.mxu0 0
    %319 = vmatprep.subr.bf16.mxu0 0
    %320 = vmatpush2.bf16.msra.mxu0 0
    %321 = vmatprep.subr.bf16.mxu0 0
    %322 = vmatpush2.bf16.msra.mxu0 0
    %323 = vmatprep.subr.bf16.mxu0 0
    %324 = vmatpush2.bf16.msra.mxu0 0
    %325 = vmatprep.subr.bf16.mxu0 0
    %326 = vmatpush2.bf16.msra.mxu0 0
    %327 = vmatprep.subr.bf16.mxu0 0
    %328 = vmatpush2.bf16.msra.mxu0 0
    %329 = vmatprep.subr.bf16.mxu0 0
    %330 = vmatpush2.bf16.msra.mxu0 0
    %331 = vmatprep.mubr.bf16.mxu0 0
    %332 = vmatmul.mubr.bf16.gmra.mxu0 %v232
    %v333 = vpop.f32.mrf.mxu0
    %v334 = vadd.f32 0.0, %v333
    %v335 = vpop.f32.mrf.mxu0
    %v336 = vpop.f32.mrf.mxu0
    %v337 = vadd.f32 0.0, %v336
    %v338 = vpop.f32.mrf.mxu0
    %339 = vdwg.mxu0
    %v340 = vmax.f32 %v233, 1e-20
    %v341 = vmax.f32 %v234, 1e-20
    %v342 = vrcp.pop %v340
    %v343 = vrcp.pop %v341
    %v344 = vmul.f32 %v334, %v342
    %v345 = vmul.f32 %v337, %v343
    %v346 = vld [vmem:[%s5] sm:$0xf]
    %v347 = vld [vmem:[%s5 + $0x4] sm:$0xf]
    %v348 = vld [vmem:[%s6] sm:$0xf]
    %v351 = vunpack.c.l.b16 %v346
    %v352 = vunpack.c.l.b16 %v347
    %v353 = vpack.c.b16 %v352, %v351
    %vm354 = vcmask 64512
    %v356 = vsel %vm354, %v353, 0
    %vm358 = vcmask 1043456
    %v360 = vsel %vm358, %v348, 0
    %362 = vmatprep.subr.bf16.mxu0 0
    %363 = vmatpush1.bf16.msra.mxu0 0
    %364 = vmatprep.subr.bf16.mxu0 0
    %365 = vmatpush1.bf16.msra.mxu0 0
    %366 = vmatprep.subr.bf16.mxu0 0
    %367 = vmatpush1.bf16.msra.mxu0 0
    %368 = vmatprep.subr.bf16.mxu0 0
    %369 = vmatpush1.bf16.msra.mxu0 0
    %370 = vmatprep.subr.bf16.mxu0 0
    %371 = vmatpush1.bf16.msra.mxu0 0
    %372 = vmatprep.subr.bf16.mxu0 0
    %373 = vmatpush1.bf16.msra.mxu0 0
    %374 = vmatprep.subr.bf16.mxu0 0
    %375 = vmatpush1.bf16.msra.mxu0 0
    %376 = vmatprep.subr.bf16.mxu0 0
    %377 = vmatpush1.bf16.msra.mxu0 %v360
    %378 = vmatprep.subr.bf16.mxu0 0
    %379 = vmatpush2.bf16.msra.mxu0 0
    %380 = vmatprep.subr.bf16.mxu0 0
    %381 = vmatpush2.bf16.msra.mxu0 0
    %382 = vmatprep.subr.bf16.mxu0 0
    %383 = vmatpush2.bf16.msra.mxu0 0
    %384 = vmatprep.subr.bf16.mxu0 0
    %385 = vmatpush2.bf16.msra.mxu0 0
    %386 = vmatprep.subr.bf16.mxu0 0
    %387 = vmatpush2.bf16.msra.mxu0 0
    %388 = vmatprep.subr.bf16.mxu0 0
    %389 = vmatpush2.bf16.msra.mxu0 0
    %390 = vmatprep.subr.bf16.mxu0 0
    %391 = vmatpush2.bf16.msra.mxu0 0
    %392 = vmatprep.subr.bf16.mxu0 0
    %393 = vmatpush2.bf16.msra.mxu0 0
    %394 = vmatprep.mubr.bf16.mxu0 0
    %395 = vmatmul.mubr.bf16.gmra.mxu0 %v356
    %v396 = vpop.f32.mrf.mxu0
    %v397 = vadd.f32 0.0, %v396
    %v398 = vpop.f32.mrf.mxu0
    %v399 = vpop.f32.mrf.mxu0
    %v400 = vadd.f32 0.0, %v399
    %v401 = vpop.f32.mrf.mxu0
    %402 = vdwg.mxu0
    %v403 = vadd.f32 %v344, %v397
    %v404 = vadd.f32 %v345, %v400
    %v405 = vld [vmem:[%s7] sm:$0x1]
    %v407 = vlaneseq
    %v408 = vshrl.u32 %v407, 7
    %v409 = vsub.s32 0, %v408
    %v410 = vrot.slane %v405, %v409
    %v412 = vadd.f32 %v403, %v410
    %v413 = vadd.f32 %v404, %v410
    %v414 = vmax.f32 %v412, 0.0
    %v415 = vmax.f32 %v413, 0.0
    %v416 = vld [vmem:[#allocation5] sm:$0xf]
    %v417 = vld [vmem:[#allocation5 + $0x4] sm:$0xf]
    %v418 = vld [vmem:[#allocation5 + $0x8] sm:$0xf]
    %v419 = vld [vmem:[#allocation5 + $0xc] sm:$0xf]
    %v420 = vld [vmem:[#allocation5 + $0x10] sm:$0xf]
    %v421 = vld [vmem:[#allocation5 + $0x14] sm:$0xf]
    %v422 = vld [vmem:[#allocation5 + $0x18] sm:$0xf]
    %v423 = vld [vmem:[#allocation5 + $0x1c] sm:$0xf]
    %v424 = vld [vmem:[#allocation5 + $0x20] sm:$0xf]
    %v425 = vld [vmem:[#allocation5 + $0x24] sm:$0xf]
    %v426 = vld [vmem:[#allocation5 + $0x28] sm:$0xf]
    %v427 = vld [vmem:[#allocation5 + $0x2c] sm:$0xf]
    %v428 = vld [vmem:[#allocation5 + $0x30] sm:$0xf]
    %v429 = vld [vmem:[#allocation5 + $0x34] sm:$0xf]
    %v430 = vld [vmem:[#allocation5 + $0x38] sm:$0xf]
    %v431 = vld [vmem:[#allocation5 + $0x3c] sm:$0xf]
    %v432 = vpack.c.bf16 %v415, %v414
    %v433 = vld [vmem:[%s9] sm:$0x1]
    %v435 = vlaneseq
    %v436 = vshrl.u32 %v435, 7
    %v437 = vsub.s32 0, %v436
    %v438 = vrot.slane %v433, %v437
    %v456 = vunpack.c.l.b16 %v416
    %v457 = vunpack.c.l.b16 %v417
    %v458 = vunpack.c.l.b16 %v418
    %v459 = vunpack.c.l.b16 %v419
    %v460 = vunpack.c.l.b16 %v420
    %v461 = vunpack.c.l.b16 %v421
    %v462 = vunpack.c.l.b16 %v422
    %v463 = vunpack.c.l.b16 %v423
    %v464 = vunpack.c.l.b16 %v424
    %v465 = vunpack.c.l.b16 %v425
    %v466 = vunpack.c.l.b16 %v426
    %v467 = vunpack.c.l.b16 %v427
    %v468 = vunpack.c.l.b16 %v428
    %v469 = vunpack.c.l.b16 %v429
    %v470 = vunpack.c.l.b16 %v430
    %v471 = vunpack.c.l.b16 %v431
    %v472 = vpack.c.b16 %v457, %v456
    %v473 = vpack.c.b16 %v459, %v458
    %v474 = vpack.c.b16 %v461, %v460
    %v475 = vpack.c.b16 %v463, %v462
    %v476 = vpack.c.b16 %v465, %v464
    %v477 = vpack.c.b16 %v467, %v466
    %v478 = vpack.c.b16 %v469, %v468
    %v479 = vpack.c.b16 %v471, %v470
    %488 = vmatprep.subr.bf16.mxu0 0
    %489 = vmatpush1.bf16.msra.mxu0 %v479
    %490 = vmatprep.subr.bf16.mxu0 0
    %491 = vmatpush1.bf16.msra.mxu0 %v478
    %492 = vmatprep.subr.bf16.mxu0 0
    %493 = vmatpush1.bf16.msra.mxu0 %v477
    %494 = vmatprep.subr.bf16.mxu0 0
    %495 = vmatpush1.bf16.msra.mxu0 %v476
    %496 = vmatprep.subr.bf16.mxu0 0
    %497 = vmatpush1.bf16.msra.mxu0 %v475
    %498 = vmatprep.subr.bf16.mxu0 0
    %499 = vmatpush1.bf16.msra.mxu0 %v474
    %500 = vmatprep.subr.bf16.mxu0 0
    %501 = vmatpush1.bf16.msra.mxu0 %v473
    %502 = vmatprep.subr.bf16.mxu0 0
    %503 = vmatpush1.bf16.msra.mxu0 %v472
    %504 = vmatprep.subr.bf16.mxu0 0
    %505 = vmatpush2.bf16.msra.mxu0 0
    %506 = vmatprep.subr.bf16.mxu0 0
    %507 = vmatpush2.bf16.msra.mxu0 0
    %508 = vmatprep.subr.bf16.mxu0 0
    %509 = vmatpush2.bf16.msra.mxu0 0
    %510 = vmatprep.subr.bf16.mxu0 0
    %511 = vmatpush2.bf16.msra.mxu0 0
    %512 = vmatprep.subr.bf16.mxu0 0
    %513 = vmatpush2.bf16.msra.mxu0 0
    %514 = vmatprep.subr.bf16.mxu0 0
    %515 = vmatpush2.bf16.msra.mxu0 0
    %516 = vmatprep.subr.bf16.mxu0 0
    %517 = vmatpush2.bf16.msra.mxu0 0
    %518 = vmatprep.subr.bf16.mxu0 0
    %519 = vmatpush2.bf16.msra.mxu0 0
    %520 = vmatprep.mubr.bf16.mxu0 0
    %521 = vmatmul.mubr.bf16.gmra.mxu0 %v432
    %v522 = vpop.f32.mrf.mxu0
    %v523 = vadd.f32 %v438, %v522
    %v524 = vpop.f32.mrf.mxu0
    %v525 = vpop.f32.mrf.mxu0
    %v526 = vadd.f32 %v438, %v525
    %v527 = vpop.f32.mrf.mxu0
    %528 = vdwg.mxu0
    %v529 = vpack.c.bf16 %v526, %v523
    %v531 = vunpack.c.l.b16 %v529
    %v532 = vunpack.c.h.b16 %v529
    %v533 = vpack.c.b16 %v531, %v531
    %v534 = vpack.c.b16 %v532, %v532
    %537 = vst [vmem:[#allocation7] sm:$0xf] %v533
    %538 = vst [vmem:[#allocation7 + $0x4] sm:$0xf] %v534
    // Predicated region
    $region50: #{tpu_custom_call.1} parent=1 // pred_check
      _
    $region51: #{tpu_custom_call.1} parent=1 // pred_check_branch
      %540 = sbr.rel (0) target = $region53
    $region52: #{tpu_custom_call.1} parent=1 // pred_region
      %s542 = ssub.s32 128, 128
      %543 = vsyncadd [#allocation4], %s542
      %s544 = sshll.u32 [#allocation7], 4
      %s545 = int_to_ptr.vmem [resolvable:$true] %s544
      %550 = dma.vmem_to_hbm [thread:$0]  %s545, 128, %s10, [#allocation4], 64, 64, 4
    $region53: #{tpu_custom_call.1} parent=1 // pred_fallthru
      _
    // Predicated region
    $region54: #{tpu_custom_call.1} parent=1 // pred_check
      _
    $region55: #{tpu_custom_call.1} parent=1 // pred_check_branch
      %552 = sbr.rel (0) target = $region57
    $region56: #{tpu_custom_call.1} parent=1 // pred_region
      %553 = dma.done [#allocation4], 128
    $region57: #{tpu_custom_call.1} parent=1 // pred_fallthru
      _
    %554 = vsyncpa [#allocation3], 1
    %555 = vsyncpa [#allocation6], 1
    %556 = vsyncpa [#allocation4], 1

// kernel: tpu_custom_call.1
$region0: #{tpu_custom_call.1}
  #allocation0 [shape = 'u32[]', space=smem, size = 0x4, offset = 0x4, fixed_abs, tag = 'smem constant byte address 0x4 - core index']
  #allocation1 [shape = 'u32[144,128]{1,0:T(1,128)}', space=vmem, size = 0x12000, scoped, tag = 'internal scratch']
  %s0 = inlined_call_operand.vmem [shape: f32[3,128], index: 0, kind: input, shape index: {}]
  %s1 = inlined_call_operand.vmem [shape: s32[1,128], index: 1, kind: input, shape index: {}]
  %s2 = inlined_call_operand.hbm [shape: bf16[128,128], index: 2, kind: input, shape index: {}]
  %s3 = inlined_call_operand.vmem [shape: f32[16,3], index: 3, kind: input, shape index: {}]
  %s4 = inlined_call_operand.vmem [shape: s32[16,1], index: 4, kind: input, shape index: {}]
  %s5 = inlined_call_operand.vmem [shape: bf16[16,8], index: 5, kind: input, shape index: {}]
  %s6 = inlined_call_operand.vmem [shape: bf16[8,128], index: 6, kind: input, shape index: {}]
  %s7 = inlined_call_operand.vmem [shape: f32[1,128], index: 7, kind: input, shape index: {}]
  %s8 = inlined_call_operand.hbm [shape: bf16[128,128], index: 8, kind: input, shape index: {}]
  %s9 = inlined_call_operand.vmem [shape: f32[1,128], index: 9, kind: input, shape index: {}]
  %s10 = inlined_call_operand.hbm [shape: bf16[16,128], index: 10, kind: output, shape index: {}]
  %s11 = sld [smem:[#allocation0]]
  $region58: #{tpu_custom_call.1} parent=0
    _
  %s13 = ssub.s32 1, %s11
  %s14 = scalar_select 0, %s13, %s11
  $region1: #{tpu_custom_call.1} parent=0
    #allocation2 [shape = 'u8[32768]{0}', space=vmem, size = 0x8000, scoped, tag = 'input window, operand 2, single buffered']
    #allocation3 [shape = 's32[1]{0}', space=sflag, size = 0x4, scoped, tag = 'scoped memory for tpu_custom_call.1']
    #allocation4 [shape = 's32[1]{0}', space=sflag, size = 0x4, scoped, tag = 'scoped memory for tpu_custom_call.1']
    #allocation5 [shape = 'u8[32768]{0}', space=vmem, size = 0x8000, scoped, tag = 'input window, operand 8, single buffered']
    #allocation6 [shape = 's32[1]{0}', space=sflag, size = 0x4, scoped, tag = 'scoped memory for tpu_custom_call.1']
    #allocation7 [shape = 'u8[4096]{0}', space=vmem, size = 0x1000, scoped, tag = 'output window, operand 0, single buffered']
    %15 = vsyncpa [#allocation3], 0
    %16 = vsyncpa [#allocation6], 0
    %17 = vsyncpa [#allocation4], 0
    // Predicated region
    $region2: #{tpu_custom_call.1} parent=1 // pred_check
      _
    $region3: #{tpu_custom_call.1} parent=1 // pred_check_branch
      %19 = sbr.rel (0) target = $region5
    $region4: #{tpu_custom_call.1} parent=1 // pred_region
      _
    $region5: #{tpu_custom_call.1} parent=1 // pred_fallthru
      _
    // Predicated region
    $region6: #{tpu_custom_call.1} parent=1 // pred_check
      _
    $region7: #{tpu_custom_call.1} parent=1 // pred_check_branch
      %21 = sbr.rel (0) target = $region9
    $region8: #{tpu_custom_call.1} parent=1 // pred_region
      _
    $region9: #{tpu_custom_call.1} parent=1 // pred_fallthru
      _
    // Predicated region
    $region10: #{tpu_custom_call.1} parent=1 // pred_check
      _
    $region11: #{tpu_custom_call.1} parent=1 // pred_check_branch
      %23 = sbr.rel (0) target = $region13
    $region12: #{tpu_custom_call.1} parent=1 // pred_region
      %s25 = ssub.s32 1024, 1024
      %26 = vsyncadd [#allocation3], %s25
      %s27 = sshll.u32 [#allocation2], 4
      %s28 = int_to_ptr.vmem [resolvable:$true] %s27
      %33 = dma.hbm_to_vmem [thread:$0]  %s2, 1024, %s28, [#allocation3], 64, 64, 4
    $region13: #{tpu_custom_call.1} parent=1 // pred_fallthru
      _
    // Predicated region
    $region14: #{tpu_custom_call.1} parent=1 // pred_check
      _
    $region15: #{tpu_custom_call.1} parent=1 // pred_check_branch
      %35 = sbr.rel (0) target = $region17
    $region16: #{tpu_custom_call.1} parent=1 // pred_region
      _
    $region17: #{tpu_custom_call.1} parent=1 // pred_fallthru
      _
    // Predicated region
    $region18: #{tpu_custom_call.1} parent=1 // pred_check
      _
    $region19: #{tpu_custom_call.1} parent=1 // pred_check_branch
      %37 = sbr.rel (0) target = $region21
    $region20: #{tpu_custom_call.1} parent=1 // pred_region
      _
    $region21: #{tpu_custom_call.1} parent=1 // pred_fallthru
      _
    // Predicated region
    $region22: #{tpu_custom_call.1} parent=1 // pred_check
      _
    $region23: #{tpu_custom_call.1} parent=1 // pred_check_branch
      %39 = sbr.rel (0) target = $region25
    $region24: #{tpu_custom_call.1} parent=1 // pred_region
      _
    $region25: #{tpu_custom_call.1} parent=1 // pred_fallthru
      _
    // Predicated region
    $region26: #{tpu_custom_call.1} parent=1 // pred_check
      _
    $region27: #{tpu_custom_call.1} parent=1 // pred_check_branch
      %41 = sbr.rel (0) target = $region29
    $region28: #{tpu_custom_call.1} parent=1 // pred_region
      _
    $region29: #{tpu_custom_call.1} parent=1 // pred_fallthru
      _
    // Predicated region
    $region30: #{tpu_custom_call.1} parent=1 // pred_check
      _
    $region31: #{tpu_custom_call.1} parent=1 // pred_check_branch
      %43 = sbr.rel (0) target = $region33
    $region32: #{tpu_custom_call.1} parent=1 // pred_region
      _
    $region33: #{tpu_custom_call.1} parent=1 // pred_fallthru
      _
    // Predicated region
    $region34: #{tpu_custom_call.1} parent=1 // pred_check
      _
    $region35: #{tpu_custom_call.1} parent=1 // pred_check_branch
      %45 = sbr.rel (0) target = $region37
    $region36: #{tpu_custom_call.1} parent=1 // pred_region
      %s47 = ssub.s32 1024, 1024
      %48 = vsyncadd [#allocation6], %s47
      %s49 = sshll.u32 [#allocation5], 4
      %s50 = int_to_ptr.vmem [resolvable:$true] %s49
      %55 = dma.hbm_to_vmem [thread:$0]  %s8, 1024, %s50, [#allocation6], 64, 64, 4
    $region37: #{tpu_custom_call.1} parent=1 // pred_fallthru
      _
    // Predicated region
    $region38: #{tpu_custom_call.1} parent=1 // pred_check
      _
    $region39: #{tpu_custom_call.1} parent=1 // pred_check_branch
      %57 = sbr.rel (0) target = $region41
    $region40: #{tpu_custom_call.1} parent=1 // pred_region
      _
    $region41: #{tpu_custom_call.1} parent=1 // pred_fallthru
      _
    // Predicated region
    $region42: #{tpu_custom_call.1} parent=1 // pred_check
      _
    $region43: #{tpu_custom_call.1} parent=1 // pred_check_branch
      %59 = sbr.rel (0) target = $region45
    $region44: #{tpu_custom_call.1} parent=1 // pred_region
      %60 = dma.done [#allocation3], 1024
    $region45: #{tpu_custom_call.1} parent=1 // pred_fallthru
      _
    // Predicated region
    $region46: #{tpu_custom_call.1} parent=1 // pred_check
      _
    $region47: #{tpu_custom_call.1} parent=1 // pred_check_branch
      %62 = sbr.rel (0) target = $region49
    $region48: #{tpu_custom_call.1} parent=1 // pred_region
      %63 = dma.done [#allocation6], 1024
    $region49: #{tpu_custom_call.1} parent=1 // pred_fallthru
      _
    %v65 = vld [vmem:[%s0] sm:$0x7]
    %v66 = vld [vmem:[%s1] sm:$0x1]
    %v67 = vld [vmem:[%s3] sm:$0xff]
    %v68 = vld [vmem:[%s3 + $0x8] sm:$0xff]
    %v69 = vld [vmem:[%s4] sm:$0xff]
    %v70 = vld [vmem:[%s4 + $0x8] sm:$0xff]
    %72 = vset.pattern.permute.xlu0 0
    %73 = vperm.xlu0 %72, %v67
    %v74 = vpop.permute.xlu0 %73
    %77 = vset.pattern.permute.xlu0 0
    %78 = vperm.xlu0 %77, %v68
    %v79 = vpop.permute.xlu0 %78
    %v81 = vlaneseq
    %v82 = vshrl.u32 %v81, 7
    %v83 = vsub.s32 0, %v82
    %v84 = vrot.slane %v65, %v83
    %v85 = vmul.f32 %v74, %v84
    %v86 = vmul.f32 %v79, %v84
    %87 = vset.pattern.permute.xlu0 1
    %88 = vperm.xlu0 %87, %v67
    %v89 = vpop.permute.xlu0 %88
    %91 = vset.pattern.permute.xlu0 1
    %92 = vperm.xlu0 %91, %v68
    %v93 = vpop.permute.xlu0 %92
    %v95 = vlaneseq
    %v96 = vshrl.u32 %v95, 7
    %v97 = vsub.s32 1, %v96
    %v98 = vrot.slane %v65, %v97
    %v99 = vmul.f32 %v89, %v98
    %v100 = vmul.f32 %v93, %v98
    %v101 = vadd.f32 %v85, %v99
    %v102 = vadd.f32 %v86, %v100
    %103 = vset.pattern.permute.xlu0 2
    %104 = vperm.xlu0 %103, %v67
    %v105 = vpop.permute.xlu0 %104
    %107 = vset.pattern.permute.xlu0 2
    %108 = vperm.xlu0 %107, %v68
    %v109 = vpop.permute.xlu0 %108
    %v111 = vlaneseq
    %v112 = vshrl.u32 %v111, 7
    %v113 = vsub.s32 2, %v112
    %v114 = vrot.slane %v65, %v113
    %v115 = vmul.f32 %v105, %v114
    %v116 = vmul.f32 %v109, %v114
    %v117 = vadd.f32 %v101, %v115
    %v118 = vadd.f32 %v102, %v116
    %v119 = vmul.f32 %v67, %v67
    %v120 = vmul.f32 %v68, %v68
    %vm121 = vcmask 23552
    %v122 = vsel %vm121, %v119, 0.0
    %123 = vadd.xlane.f32.xlu0 %v122
    %v124 = vpop.xlane.xlu0 %123
    %v125 = vsel %vm121, %v120, 0.0
    %126 = vadd.xlane.f32.xlu0 %v125
    %v127 = vpop.xlane.xlu0 %126
    %v128 = vmul.f32 %v65, %v65
    %vm129 = vcmask 1042432
    %v130 = vsel %vm129, %v128, 0.0
    %v131 = vrot.slane %v130, 4
    %v132 = vadd.f32 %v130, %v131
    %v133 = vrot.slane %v132, 2
    %v134 = vadd.f32 %v132, %v133
    %v135 = vrot.slane %v134, 1
    %v136 = vadd.f32 %v134, %v135
    %v137 = vadd.f32 %v124, %v136
    %v138 = vadd.f32 %v127, %v136
    %v139 = vmul.f32 %v117, 2.0
    %v140 = vmul.f32 %v118, 2.0
    %v141 = vsub.f32 %v137, %v139
    %v142 = vsub.f32 %v138, %v140
    %v143 = vmax.f32 %v141, 0.0
    %v144 = vmax.f32 %v142, 0.0
    %145 = vset.pattern.permute.xlu0 0
    %146 = vperm.xlu0 %145, %v69
    %v147 = vpop.permute.xlu0 %146
    %148 = vset.pattern.permute.xlu0 0
    %149 = vperm.xlu0 %148, %v70
    %v150 = vpop.permute.xlu0 %149
    %v151 = vlaneseq
    %v152 = vshrl.u32 %v151, 7
    %v153 = vsub.s32 0, %v152
    %v154 = vrot.slane %v66, %v153
    %vm155 = vcmp.eq.s32.totalorder %v147, %v154
    %vm156 = vcmp.eq.s32.totalorder %v150, %v154
    %v157 = vsel %vm155, %v143, 1e+30
    %v158 = vsel %vm156, %v144, 1e+30
    %159 = vmin.xlane.f32.xlu0 %v157
    %v160 = vpop.xlane.xlu0 %159
    %161 = vmin.xlane.f32.xlu0 %v158
    %v162 = vpop.xlane.xlu0 %161
    %vm163 = vcmp.lt.f32.partialorder %v160, 1e+29
    %vm164 = vcmp.lt.f32.partialorder %v162, 1e+29
    %v165 = vmax.f32 %v160, 1e-16
    %v166 = vmax.f32 %v162, 1e-16
    %v167 = vrcp.pop %v165
    %v168 = vrcp.pop %v166
    %v169 = vsel %vm163, %v167, 0.0
    %v170 = vsel %vm164, %v168, 0.0
    %vm171 = vcmp.le.f32.partialorder %v157, %v160
    %vm172 = vcmp.le.f32.partialorder %v158, %v162
    %v173 = vpack.c.bf16 %v170, %v169
    %v174 = vsel %vm171, 1, 0
    %v175 = vsel %vm172, 1, 0
    %v176 = vcvt.s32.f32 %v174
    %v177 = vcvt.s32.f32 %v175
    %v178 = vpack.c.bf16 %v177, %v176
    %v179 = vmul.bf16 %v173, %v178
    %v180 = vadd.bf16 %v179, 0
    %v181 = vadd.f32 %v169, 0.0
    %v182 = vadd.f32 %v170, 0.0
    %v183 = vsel %vm171, 1e+30, %v157
    %v184 = vsel %vm172, 1e+30, %v158
    %185 = vmin.xlane.f32.xlu0 %v183
    %v186 = vpop.xlane.xlu0 %185
    %187 = vmin.xlane.f32.xlu0 %v184
    %v188 = vpop.xlane.xlu0 %187
    %vm189 = vcmp.lt.f32.partialorder %v186, 1e+29
    %vm190 = vcmp.lt.f32.partialorder %v188, 1e+29
    %v191 = vmax.f32 %v186, 1e-16
    %v192 = vmax.f32 %v188, 1e-16
    %v193 = vrcp.pop %v191
    %v194 = vrcp.pop %v192
    %v195 = vsel %vm189, %v193, 0.0
    %v196 = vsel %vm190, %v194, 0.0
    %vm197 = vcmp.le.f32.partialorder %v183, %v186
    %vm198 = vcmp.le.f32.partialorder %v184, %v188
    %v199 = vpack.c.bf16 %v196, %v195
    %v200 = vsel %vm197, 1, 0
    %v201 = vsel %vm198, 1, 0
    %v202 = vcvt.s32.f32 %v200
    %v203 = vcvt.s32.f32 %v201
    %v204 = vpack.c.bf16 %v203, %v202
    %v205 = vmul.bf16 %v199, %v204
    %v206 = vadd.bf16 %v180, %v205
    %v207 = vadd.f32 %v181, %v195
    %v208 = vadd.f32 %v182, %v196
    %v209 = vsel %vm197, 1e+30, %v183
    %v210 = vsel %vm198, 1e+30, %v184
    %211 = vmin.xlane.f32.xlu0 %v209
    %v212 = vpop.xlane.xlu0 %211
    %213 = vmin.xlane.f32.xlu0 %v210
    %v214 = vpop.xlane.xlu0 %213
    %vm215 = vcmp.lt.f32.partialorder %v212, 1e+29
    %vm216 = vcmp.lt.f32.partialorder %v214, 1e+29
    %v217 = vmax.f32 %v212, 1e-16
    %v218 = vmax.f32 %v214, 1e-16
    %v219 = vrcp.pop %v217
    %v220 = vrcp.pop %v218
    %v221 = vsel %vm215, %v219, 0.0
    %v222 = vsel %vm216, %v220, 0.0
    %vm223 = vcmp.le.f32.partialorder %v209, %v212
    %vm224 = vcmp.le.f32.partialorder %v210, %v214
    %v225 = vpack.c.bf16 %v222, %v221
    %v226 = vsel %vm223, 1, 0
    %v227 = vsel %vm224, 1, 0
    %v228 = vcvt.s32.f32 %v226
    %v229 = vcvt.s32.f32 %v227
    %v230 = vpack.c.bf16 %v229, %v228
    %v231 = vmul.bf16 %v225, %v230
    %v232 = vadd.bf16 %v206, %v231
    %v233 = vadd.f32 %v207, %v221
    %v234 = vadd.f32 %v208, %v222
    %v235 = vld [vmem:[#allocation2] sm:$0xf]
    %v236 = vld [vmem:[#allocation2 + $0x4] sm:$0xf]
    %v237 = vld [vmem:[#allocation2 + $0x8] sm:$0xf]
    %v238 = vld [vmem:[#allocation2 + $0xc] sm:$0xf]
    %v239 = vld [vmem:[#allocation2 + $0x10] sm:$0xf]
    %v240 = vld [vmem:[#allocation2 + $0x14] sm:$0xf]
    %v241 = vld [vmem:[#allocation2 + $0x18] sm:$0xf]
    %v242 = vld [vmem:[#allocation2 + $0x1c] sm:$0xf]
    %v243 = vld [vmem:[#allocation2 + $0x20] sm:$0xf]
    %v244 = vld [vmem:[#allocation2 + $0x24] sm:$0xf]
    %v245 = vld [vmem:[#allocation2 + $0x28] sm:$0xf]
    %v246 = vld [vmem:[#allocation2 + $0x2c] sm:$0xf]
    %v247 = vld [vmem:[#allocation2 + $0x30] sm:$0xf]
    %v248 = vld [vmem:[#allocation2 + $0x34] sm:$0xf]
    %v249 = vld [vmem:[#allocation2 + $0x38] sm:$0xf]
    %v250 = vld [vmem:[#allocation2 + $0x3c] sm:$0xf]
    %v267 = vunpack.c.l.b16 %v235
    %v268 = vunpack.c.l.b16 %v236
    %v269 = vunpack.c.l.b16 %v237
    %v270 = vunpack.c.l.b16 %v238
    %v271 = vunpack.c.l.b16 %v239
    %v272 = vunpack.c.l.b16 %v240
    %v273 = vunpack.c.l.b16 %v241
    %v274 = vunpack.c.l.b16 %v242
    %v275 = vunpack.c.l.b16 %v243
    %v276 = vunpack.c.l.b16 %v244
    %v277 = vunpack.c.l.b16 %v245
    %v278 = vunpack.c.l.b16 %v246
    %v279 = vunpack.c.l.b16 %v247
    %v280 = vunpack.c.l.b16 %v248
    %v281 = vunpack.c.l.b16 %v249
    %v282 = vunpack.c.l.b16 %v250
    %v283 = vpack.c.b16 %v268, %v267
    %v284 = vpack.c.b16 %v270, %v269
    %v285 = vpack.c.b16 %v272, %v271
    %v286 = vpack.c.b16 %v274, %v273
    %v287 = vpack.c.b16 %v276, %v275
    %v288 = vpack.c.b16 %v278, %v277
    %v289 = vpack.c.b16 %v280, %v279
    %v290 = vpack.c.b16 %v282, %v281
    %299 = vmatprep.subr.bf16.mxu0 0
    %300 = vmatpush1.bf16.msra.mxu0 %v290
    %301 = vmatprep.subr.bf16.mxu0 0
    %302 = vmatpush1.bf16.msra.mxu0 %v289
    %303 = vmatprep.subr.bf16.mxu0 0
    %304 = vmatpush1.bf16.msra.mxu0 %v288
    %305 = vmatprep.subr.bf16.mxu0 0
    %306 = vmatpush1.bf16.msra.mxu0 %v287
    %307 = vmatprep.subr.bf16.mxu0 0
    %308 = vmatpush1.bf16.msra.mxu0 %v286
    %309 = vmatprep.subr.bf16.mxu0 0
    %310 = vmatpush1.bf16.msra.mxu0 %v285
    %311 = vmatprep.subr.bf16.mxu0 0
    %312 = vmatpush1.bf16.msra.mxu0 %v284
    %313 = vmatprep.subr.bf16.mxu0 0
    %314 = vmatpush1.bf16.msra.mxu0 %v283
    %315 = vmatprep.subr.bf16.mxu0 0
    %316 = vmatpush2.bf16.msra.mxu0 0
    %317 = vmatprep.subr.bf16.mxu0 0
    %318 = vmatpush2.bf16.msra.mxu0 0
    %319 = vmatprep.subr.bf16.mxu0 0
    %320 = vmatpush2.bf16.msra.mxu0 0
    %321 = vmatprep.subr.bf16.mxu0 0
    %322 = vmatpush2.bf16.msra.mxu0 0
    %323 = vmatprep.subr.bf16.mxu0 0
    %324 = vmatpush2.bf16.msra.mxu0 0
    %325 = vmatprep.subr.bf16.mxu0 0
    %326 = vmatpush2.bf16.msra.mxu0 0
    %327 = vmatprep.subr.bf16.mxu0 0
    %328 = vmatpush2.bf16.msra.mxu0 0
    %329 = vmatprep.subr.bf16.mxu0 0
    %330 = vmatpush2.bf16.msra.mxu0 0
    %331 = vmatprep.mubr.bf16.mxu0 0
    %332 = vmatmul.mubr.bf16.gmra.mxu0 %v232
    %v333 = vpop.f32.mrf.mxu0
    %v334 = vadd.f32 0.0, %v333
    %v335 = vpop.f32.mrf.mxu0
    %v336 = vpop.f32.mrf.mxu0
    %v337 = vadd.f32 0.0, %v336
    %v338 = vpop.f32.mrf.mxu0
    %339 = vdwg.mxu0
    %v340 = vmax.f32 %v233, 1e-20
    %v341 = vmax.f32 %v234, 1e-20
    %v342 = vrcp.pop %v340
    %v343 = vrcp.pop %v341
    %v344 = vmul.f32 %v334, %v342
    %v345 = vmul.f32 %v337, %v343
    %v346 = vld [vmem:[%s5] sm:$0xf]
    %v347 = vld [vmem:[%s5 + $0x4] sm:$0xf]
    %v348 = vld [vmem:[%s6] sm:$0xf]
    %v351 = vunpack.c.l.b16 %v346
    %v352 = vunpack.c.l.b16 %v347
    %v353 = vpack.c.b16 %v352, %v351
    %vm354 = vcmask 64512
    %v356 = vsel %vm354, %v353, 0
    %vm358 = vcmask 1043456
    %v360 = vsel %vm358, %v348, 0
    %362 = vmatprep.subr.bf16.mxu0 0
    %363 = vmatpush1.bf16.msra.mxu0 0
    %364 = vmatprep.subr.bf16.mxu0 0
    %365 = vmatpush1.bf16.msra.mxu0 0
    %366 = vmatprep.subr.bf16.mxu0 0
    %367 = vmatpush1.bf16.msra.mxu0 0
    %368 = vmatprep.subr.bf16.mxu0 0
    %369 = vmatpush1.bf16.msra.mxu0 0
    %370 = vmatprep.subr.bf16.mxu0 0
    %371 = vmatpush1.bf16.msra.mxu0 0
    %372 = vmatprep.subr.bf16.mxu0 0
    %373 = vmatpush1.bf16.msra.mxu0 0
    %374 = vmatprep.subr.bf16.mxu0 0
    %375 = vmatpush1.bf16.msra.mxu0 0
    %376 = vmatprep.subr.bf16.mxu0 0
    %377 = vmatpush1.bf16.msra.mxu0 %v360
    %378 = vmatprep.subr.bf16.mxu0 0
    %379 = vmatpush2.bf16.msra.mxu0 0
    %380 = vmatprep.subr.bf16.mxu0 0
    %381 = vmatpush2.bf16.msra.mxu0 0
    %382 = vmatprep.subr.bf16.mxu0 0
    %383 = vmatpush2.bf16.msra.mxu0 0
    %384 = vmatprep.subr.bf16.mxu0 0
    %385 = vmatpush2.bf16.msra.mxu0 0
    %386 = vmatprep.subr.bf16.mxu0 0
    %387 = vmatpush2.bf16.msra.mxu0 0
    %388 = vmatprep.subr.bf16.mxu0 0
    %389 = vmatpush2.bf16.msra.mxu0 0
    %390 = vmatprep.subr.bf16.mxu0 0
    %391 = vmatpush2.bf16.msra.mxu0 0
    %392 = vmatprep.subr.bf16.mxu0 0
    %393 = vmatpush2.bf16.msra.mxu0 0
    %394 = vmatprep.mubr.bf16.mxu0 0
    %395 = vmatmul.mubr.bf16.gmra.mxu0 %v356
    %v396 = vpop.f32.mrf.mxu0
    %v397 = vadd.f32 0.0, %v396
    %v398 = vpop.f32.mrf.mxu0
    %v399 = vpop.f32.mrf.mxu0
    %v400 = vadd.f32 0.0, %v399
    %v401 = vpop.f32.mrf.mxu0
    %402 = vdwg.mxu0
    %v403 = vadd.f32 %v344, %v397
    %v404 = vadd.f32 %v345, %v400
    %v405 = vld [vmem:[%s7] sm:$0x1]
    %v407 = vlaneseq
    %v408 = vshrl.u32 %v407, 7
    %v409 = vsub.s32 0, %v408
    %v410 = vrot.slane %v405, %v409
    %v412 = vadd.f32 %v403, %v410
    %v413 = vadd.f32 %v404, %v410
    %v414 = vmax.f32 %v412, 0.0
    %v415 = vmax.f32 %v413, 0.0
    %v416 = vld [vmem:[#allocation5] sm:$0xf]
    %v417 = vld [vmem:[#allocation5 + $0x4] sm:$0xf]
    %v418 = vld [vmem:[#allocation5 + $0x8] sm:$0xf]
    %v419 = vld [vmem:[#allocation5 + $0xc] sm:$0xf]
    %v420 = vld [vmem:[#allocation5 + $0x10] sm:$0xf]
    %v421 = vld [vmem:[#allocation5 + $0x14] sm:$0xf]
    %v422 = vld [vmem:[#allocation5 + $0x18] sm:$0xf]
    %v423 = vld [vmem:[#allocation5 + $0x1c] sm:$0xf]
    %v424 = vld [vmem:[#allocation5 + $0x20] sm:$0xf]
    %v425 = vld [vmem:[#allocation5 + $0x24] sm:$0xf]
    %v426 = vld [vmem:[#allocation5 + $0x28] sm:$0xf]
    %v427 = vld [vmem:[#allocation5 + $0x2c] sm:$0xf]
    %v428 = vld [vmem:[#allocation5 + $0x30] sm:$0xf]
    %v429 = vld [vmem:[#allocation5 + $0x34] sm:$0xf]
    %v430 = vld [vmem:[#allocation5 + $0x38] sm:$0xf]
    %v431 = vld [vmem:[#allocation5 + $0x3c] sm:$0xf]
    %v432 = vpack.c.bf16 %v415, %v414
    %v433 = vld [vmem:[%s9] sm:$0x1]
    %v435 = vlaneseq
    %v436 = vshrl.u32 %v435, 7
    %v437 = vsub.s32 0, %v436
    %v438 = vrot.slane %v433, %v437
    %v456 = vunpack.c.l.b16 %v416
    %v457 = vunpack.c.l.b16 %v417
    %v458 = vunpack.c.l.b16 %v418
    %v459 = vunpack.c.l.b16 %v419
    %v460 = vunpack.c.l.b16 %v420
    %v461 = vunpack.c.l.b16 %v421
    %v462 = vunpack.c.l.b16 %v422
    %v463 = vunpack.c.l.b16 %v423
    %v464 = vunpack.c.l.b16 %v424
    %v465 = vunpack.c.l.b16 %v425
    %v466 = vunpack.c.l.b16 %v426
    %v467 = vunpack.c.l.b16 %v427
    %v468 = vunpack.c.l.b16 %v428
    %v469 = vunpack.c.l.b16 %v429
    %v470 = vunpack.c.l.b16 %v430
    %v471 = vunpack.c.l.b16 %v431
    %v472 = vpack.c.b16 %v457, %v456
    %v473 = vpack.c.b16 %v459, %v458
    %v474 = vpack.c.b16 %v461, %v460
    %v475 = vpack.c.b16 %v463, %v462
    %v476 = vpack.c.b16 %v465, %v464
    %v477 = vpack.c.b16 %v467, %v466
    %v478 = vpack.c.b16 %v469, %v468
    %v479 = vpack.c.b16 %v471, %v470
    %488 = vmatprep.subr.bf16.mxu0 0
    %489 = vmatpush1.bf16.msra.mxu0 %v479
    %490 = vmatprep.subr.bf16.mxu0 0
    %491 = vmatpush1.bf16.msra.mxu0 %v478
    %492 = vmatprep.subr.bf16.mxu0 0
    %493 = vmatpush1.bf16.msra.mxu0 %v477
    %494 = vmatprep.subr.bf16.mxu0 0
    %495 = vmatpush1.bf16.msra.mxu0 %v476
    %496 = vmatprep.subr.bf16.mxu0 0
    %497 = vmatpush1.bf16.msra.mxu0 %v475
    %498 = vmatprep.subr.bf16.mxu0 0
    %499 = vmatpush1.bf16.msra.mxu0 %v474
    %500 = vmatprep.subr.bf16.mxu0 0
    %501 = vmatpush1.bf16.msra.mxu0 %v473
    %502 = vmatprep.subr.bf16.mxu0 0
    %503 = vmatpush1.bf16.msra.mxu0 %v472
    %504 = vmatprep.subr.bf16.mxu0 0
    %505 = vmatpush2.bf16.msra.mxu0 0
    %506 = vmatprep.subr.bf16.mxu0 0
    %507 = vmatpush2.bf16.msra.mxu0 0
    %508 = vmatprep.subr.bf16.mxu0 0
    %509 = vmatpush2.bf16.msra.mxu0 0
    %510 = vmatprep.subr.bf16.mxu0 0
    %511 = vmatpush2.bf16.msra.mxu0 0
    %512 = vmatprep.subr.bf16.mxu0 0
    %513 = vmatpush2.bf16.msra.mxu0 0
    %514 = vmatprep.subr.bf16.mxu0 0
    %515 = vmatpush2.bf16.msra.mxu0 0
    %516 = vmatprep.subr.bf16.mxu0 0
    %517 = vmatpush2.bf16.msra.mxu0 0
    %518 = vmatprep.subr.bf16.mxu0 0
    %519 = vmatpush2.bf16.msra.mxu0 0
    %520 = vmatprep.mubr.bf16.mxu0 0
    %521 = vmatmul.mubr.bf16.gmra.mxu0 %v432
    %v522 = vpop.f32.mrf.mxu0
    %v523 = vadd.f32 %v438, %v522
    %v524 = vpop.f32.mrf.mxu0
    %v525 = vpop.f32.mrf.mxu0
    %v526 = vadd.f32 %v438, %v525
    %v527 = vpop.f32.mrf.mxu0
    %528 = vdwg.mxu0
    %v529 = vpack.c.bf16 %v526, %v523
    %v531 = vunpack.c.l.b16 %v529
    %v532 = vunpack.c.h.b16 %v529
    %v533 = vpack.c.b16 %v531, %v531
    %v534 = vpack.c.b16 %v532, %v532
    %537 = vst [vmem:[#allocation7] sm:$0xf] %v533
    %538 = vst [vmem:[#allocation7 + $0x4] sm:$0xf] %v534
    // Predicated region
    $region50: #{tpu_custom_call.1} parent=1 // pred_check
      _
    $region51: #{tpu_custom_call.1} parent=1 // pred_check_branch
      %540 = sbr.rel (0) target = $region53
    $region52: #{tpu_custom_call.1} parent=1 // pred_region
      %s542 = ssub.s32 128, 128
      %543 = vsyncadd [#allocation4], %s542
      %s544 = sshll.u32 [#allocation7], 4
      %s545 = int_to_ptr.vmem [resolvable:$true] %s544
      %550 = dma.vmem_to_hbm [thread:$0]  %s545, 128, %s10, [#allocation4], 64, 64, 4
    $region53: #{tpu_custom_call.1} parent=1 // pred_fallthru
      _
    // Predicated region
    $region54: #{tpu_custom_call.1} parent=1 // pred_check
      _
    $region55: #{tpu_custom_call.1} parent=1 // pred_check_branch
      %552 = sbr.rel (0) target = $region57
    $region56: #{tpu_custom_call.1} parent=1 // pred_region
      %553 = dma.done [#allocation4], 128
    $region57: #{tpu_custom_call.1} parent=1 // pred_fallthru
      _
    %554 = vsyncpa [#allocation3], 1
    %555 = vsyncpa [#allocation6], 1
    %556 = vsyncpa [#allocation4], 1

</llo_original>
